<compile_context>
chip_gen: v5e
topology: v5e:2x2
jax: 0.10.0
libtpu: 0.0.40
codegen_flags: <defaults>
</compile_context>

<pallas_src>
import math

import jax
import jax.numpy as jnp
from jax.experimental import pallas as pl
from jax.experimental.pallas import tpu as pltpu

IN_FEATURES = 784
H1, H2, H3 = 256, 128, 64
NUM_CLASSES = 10
N_PAD = 128           # lane-dense padding for the fc4 output / result store
_NEG_LARGE = -1e30    # used instead of -inf for the masked row-max


def _round_up(x, m):
    return ((x + m - 1) // m) * m


def _mlp_kernel(x_ref,
                w1_ref, b1_ref,
                w2_ref, b2_ref,
                w3_ref, b3_ref,
                w4_ref, b4_ref,
                o_ref):
    # All four matmuls + ReLU + masked log_softmax fused in one kernel.
    # Weights (<1 MB in bf16) are fully VMEM resident across the batch grid.
    # x arrives in native f32 (no wrapper-side bf16 copy); cast only for MXU.
    x = x_ref[...].astype(jnp.bfloat16)                       # (T, 784)

    h1 = jnp.dot(x, w1_ref[...], preferred_element_type=jnp.float32) + b1_ref[...]
    h1 = jnp.maximum(h1, 0.0).astype(jnp.bfloat16)            # (T, 256)
    # TODO(synk): dropout(p=0.2) is identity in eval mode; train-mode masking
    # (pltpu.prng_random_bits) intentionally not applied to match inference.

    h2 = jnp.dot(h1, w2_ref[...], preferred_element_type=jnp.float32) + b2_ref[...]
    h2 = jnp.maximum(h2, 0.0).astype(jnp.bfloat16)            # (T, 128)

    h3 = jnp.dot(h2, w3_ref[...], preferred_element_type=jnp.float32) + b3_ref[...]
    h3 = jnp.maximum(h3, 0.0).astype(jnp.bfloat16)            # (T, 64) real N, no pad

    logits = jnp.dot(h3, w4_ref[...], preferred_element_type=jnp.float32) + b4_ref[...]
    # logits: (T, 128) f32; only the first NUM_CLASSES columns are real
    # (padded weight columns and biases are zero).

    col = jax.lax.broadcasted_iota(jnp.int32, logits.shape, 1)
    valid = col < NUM_CLASSES

    # numerically stable log_softmax restricted to the 10 real columns (f32)
    m = jnp.max(jnp.where(valid, logits, _NEG_LARGE), axis=-1, keepdims=True)
    z = logits - m
    ez = jnp.where(valid, jnp.exp(z), 0.0)
    lse = jnp.log(jnp.sum(ez, axis=-1, keepdims=True))
    o_ref[...] = (z - lse).astype(o_ref.dtype)                # bf16, lane-dense 128


def _pick_tile(B, batch_tile):
    """Balanced batch tiles: multiple of 16 (bf16 sublane packing), >=2 grid
    steps whenever B allows it (v7x megacore + DMA/compute overlap), and
    padding waste bounded by <16 rows per tile."""
    b16 = _round_up(B, 16)
    if b16 <= 16:
        return 16
    n_tiles = max(2, pl.cdiv(B, batch_tile))
    return min(_round_up(batch_tile, 16), _round_up(pl.cdiv(B, n_tiles), 16))


def classifier_forward(x, params, *, batch_tile=512):
    """x: (B, 1, 28, 28) or (B, 784) float32. Returns (B, 10) f32 log-probs."""
    B = x.shape[0]
    x = x.reshape(B, -1).astype(jnp.float32)                  # == torch x.view(B, -1)
    assert x.shape[1] == IN_FEATURES

    tile = _pick_tile(B, batch_tile)
    B_pad = _round_up(B, tile)
    if B_pad != B:
        x = jnp.pad(x, ((0, B_pad - B), (0, 0)))

    (w1, b1), (w2, b2), (w3, b3), (w4, b4) = params

    # bf16 weights (MXU operands), f32 biases (VPU adds stay f32).
    w1b = w1.astype(jnp.bfloat16)
    b1f = b1.reshape(1, -1).astype(jnp.float32)
    w2b = w2.astype(jnp.bfloat16)
    b2f = b2.reshape(1, -1).astype(jnp.float32)
    w3b = w3.astype(jnp.bfloat16)                 # keep fc3 at real N=64
    b3f = b3.reshape(1, -1).astype(jnp.float32)
    # Only fc4's output is padded to 128 lanes (zeros -> padded logits are 0;
    # log_softmax reductions are masked in-kernel, padded cols sliced off).
    w4p = jnp.zeros((H3, N_PAD), jnp.bfloat16).at[:, :NUM_CLASSES].set(
        w4.astype(jnp.bfloat16))
    b4p = jnp.zeros((1, N_PAD), jnp.float32).at[:, :NUM_CLASSES].set(
        b4.reshape(1, -1).astype(jnp.float32))

    grid = (B_pad // tile,)

    def full(arr):
        # whole-array block, same block for every grid step (VMEM resident)
        return pl.BlockSpec(arr.shape, lambda i: (0,) * arr.ndim)

    out = pl.pallas_call(
        _mlp_kernel,
        out_shape=jax.ShapeDtypeStruct((B_pad, N_PAD), jnp.bfloat16),
        grid_spec=pl.GridSpec(
            grid=grid,
            in_specs=[
                pl.BlockSpec((tile, IN_FEATURES), lambda i: (i, 0)),   # x tile (f32)
                full(w1b), full(b1f),
                full(w2b), full(b2f),
                full(w3b), full(b3f),
                full(w4p), full(b4p),
            ],
            out_specs=pl.BlockSpec((tile, N_PAD), lambda i: (i, 0)),   # lane-dense
        ),
        compiler_params=pltpu.CompilerParams(
            dimension_semantics=("parallel",),
        ),
    )(x, w1b, b1f, w2b, b2f, w3b, b3f, w4p, b4p)

    return out[:B, :NUM_CLASSES].astype(jnp.float32)


def init_params(key):
    """Deterministic init matching nn.Linear's default U(-1/sqrt(fan_in), +...)."""
    dims = [(IN_FEATURES, H1), (H1, H2), (H2, H3), (H3, NUM_CLASSES)]
    params = []
    for (fan_in, fan_out) in dims:
        key, kw, kb = jax.random.split(key, 3)
        bound = 1.0 / math.sqrt(fan_in)
        # stored as (in, out) so the kernel does x @ W  (== torch x @ weight.T)
        w = jax.random.uniform(kw, (fan_in, fan_out), jnp.float32, -bound, bound)
        b = jax.random.uniform(kb, (1, fan_out), jnp.float32, -bound, bound)
        params.append((w, b))
    return params


def _reference_forward(x, params):
    """Pure-JAX f32 reference for correctness checking."""
    B = x.shape[0]
    h = x.reshape(B, -1)
    for i, (w, b) in enumerate(params):
        h = h @ w + b
        if i < 3:
            h = jnp.maximum(h, 0.0)
    return jax.nn.log_softmax(h, axis=1)


if __name__ == "__main__":
    key = jax.random.PRNGKey(0)
    kp, kx = jax.random.split(key)

    params = init_params(kp)
    # FashionMNIST-style input: NCHW (32, 1, 28, 28) -> 784 features.
    B = 32
    x = jax.random.normal(kx, (B, 1, 28, 28), jnp.float32)

    # At B=32 the tile picker yields tile=16 -> 2 grid steps (exercises the
    # tiling path and keeps both v7x TensorCores busy); default 512 for real
    # batches.
    out = classifier_forward(x, params)
    out = jax.block_until_ready(out)

    ref = _reference_forward(x, params)
    assert out.shape == (B, NUM_CLASSES)
    # bf16 MXU operands / bf16 output store with f32 accumulation -> looser
    # tolerance than pure f32.
    assert jnp.allclose(out, ref, atol=5e-2, rtol=5e-2), "mismatch vs reference"
    # log_softmax rows should sum to ~1 in prob space (bf16 output quantization
    # bounds the per-row error at ~0.4%).
    assert jnp.allclose(jnp.sum(jnp.exp(out), axis=1), 1.0, atol=1e-2)

    print("KERNEL_OK")
</pallas_src>

<mosaic_0001>
module attributes {stable_mosaic.version = 11 : i64} {
  func.func @_mlp_kernel(%arg0: i32, %arg1: memref<16x784xf32, #tpu.memory_space<vmem>>, %arg2: memref<784x256xbf16, #tpu.memory_space<vmem>>, %arg3: memref<1x256xf32, #tpu.memory_space<vmem>>, %arg4: memref<256x128xbf16, #tpu.memory_space<vmem>>, %arg5: memref<1x128xf32, #tpu.memory_space<vmem>>, %arg6: memref<128x64xbf16, #tpu.memory_space<vmem>>, %arg7: memref<1x64xf32, #tpu.memory_space<vmem>>, %arg8: memref<64x128xbf16, #tpu.memory_space<vmem>>, %arg9: memref<1x128xf32, #tpu.memory_space<vmem>>, %arg10: memref<16x128xbf16, #tpu.memory_space<vmem>>) attributes {dimension_semantics = [#tpu.dimension_semantics<parallel>], iteration_bounds = array<i64: 2>, scalar_prefetch = 0 : i64, scratch_operands = 0 : i64, tpu.core_type = #tpu.core_type<tc>, window_params = [{transform_indices = @transform_0, window_bounds = array<i64: 16, 784>}, {pipeline_mode = #tpu.pipeline_mode<synchronous>, transform_indices = @transform_1, window_bounds = array<i64: 784, 256>}, {pipeline_mode = #tpu.pipeline_mode<synchronous>, transform_indices = @transform_2, window_bounds = array<i64: 1, 256>}, {pipeline_mode = #tpu.pipeline_mode<synchronous>, transform_indices = @transform_3, window_bounds = array<i64: 256, 128>}, {pipeline_mode = #tpu.pipeline_mode<synchronous>, transform_indices = @transform_4, window_bounds = array<i64: 1, 128>}, {pipeline_mode = #tpu.pipeline_mode<synchronous>, transform_indices = @transform_5, window_bounds = array<i64: 128, 64>}, {pipeline_mode = #tpu.pipeline_mode<synchronous>, transform_indices = @transform_6, window_bounds = array<i64: 1, 64>}, {pipeline_mode = #tpu.pipeline_mode<synchronous>, transform_indices = @transform_7, window_bounds = array<i64: 64, 128>}, {pipeline_mode = #tpu.pipeline_mode<synchronous>, transform_indices = @transform_8, window_bounds = array<i64: 1, 128>}, {transform_indices = @transform_9, window_bounds = array<i64: 16, 128>}]} {
    %c0 = arith.constant 0 : index
    %c0_0 = arith.constant 0 : index
    %0 = vector.load %arg1[%c0, %c0_0] : memref<16x784xf32, #tpu.memory_space<vmem>>, vector<16x784xf32>
    %1 = arith.truncf %0 : vector<16x784xf32> to vector<16x784xbf16>
    %c0_1 = arith.constant 0 : index
    %c0_2 = arith.constant 0 : index
    %2 = vector.load %arg2[%c0_1, %c0_2] : memref<784x256xbf16, #tpu.memory_space<vmem>>, vector<784x256xbf16>
    %cst = arith.constant dense<0.000000e+00> : vector<16x256xf32>
    %3 = tpu.matmul %1, %2, %cst {dimension_numbers = #tpu.dot_dimension_numbers<[1], [0], [0], [1], [0, 0, 1, 1], [], []>} : vector<16x784xbf16>, vector<784x256xbf16>, vector<16x256xf32> -> vector<16x256xf32>
    %c0_3 = arith.constant 0 : index
    %c0_4 = arith.constant 0 : index
    %4 = vector.load %arg3[%c0_3, %c0_4] : memref<1x256xf32, #tpu.memory_space<vmem>>, vector<1x256xf32>
    %5 = vector.broadcast %4 : vector<1x256xf32> to vector<16x256xf32>
    %6 = arith.addf %3, %5 : vector<16x256xf32>
    %cst_5 = arith.constant 0.000000e+00 : f32
    %7 = vector.broadcast %cst_5 : f32 to vector<16x256xf32>
    %8 = arith.maximumf %6, %7 : vector<16x256xf32>
    %9 = arith.truncf %8 : vector<16x256xf32> to vector<16x256xbf16>
    %c0_6 = arith.constant 0 : index
    %c0_7 = arith.constant 0 : index
    %10 = vector.load %arg4[%c0_6, %c0_7] : memref<256x128xbf16, #tpu.memory_space<vmem>>, vector<256x128xbf16>
    %cst_8 = arith.constant dense<0.000000e+00> : vector<16x128xf32>
    %11 = tpu.matmul %9, %10, %cst_8 {dimension_numbers = #tpu.dot_dimension_numbers<[1], [0], [0], [1], [0, 0, 1, 1], [], []>} : vector<16x256xbf16>, vector<256x128xbf16>, vector<16x128xf32> -> vector<16x128xf32>
    %c0_9 = arith.constant 0 : index
    %c0_10 = arith.constant 0 : index
    %12 = vector.load %arg5[%c0_9, %c0_10] : memref<1x128xf32, #tpu.memory_space<vmem>>, vector<1x128xf32>
    %13 = vector.broadcast %12 : vector<1x128xf32> to vector<16x128xf32>
    %14 = arith.addf %11, %13 : vector<16x128xf32>
    %cst_11 = arith.constant 0.000000e+00 : f32
    %15 = vector.broadcast %cst_11 : f32 to vector<16x128xf32>
    %16 = arith.maximumf %14, %15 : vector<16x128xf32>
    %17 = arith.truncf %16 : vector<16x128xf32> to vector<16x128xbf16>
    %c0_12 = arith.constant 0 : index
    %c0_13 = arith.constant 0 : index
    %18 = vector.load %arg6[%c0_12, %c0_13] : memref<128x64xbf16, #tpu.memory_space<vmem>>, vector<128x64xbf16>
    %cst_14 = arith.constant dense<0.000000e+00> : vector<16x64xf32>
    %19 = tpu.matmul %17, %18, %cst_14 {dimension_numbers = #tpu.dot_dimension_numbers<[1], [0], [0], [1], [0, 0, 1, 1], [], []>} : vector<16x128xbf16>, vector<128x64xbf16>, vector<16x64xf32> -> vector<16x64xf32>
    %c0_15 = arith.constant 0 : index
    %c0_16 = arith.constant 0 : index
    %20 = vector.load %arg7[%c0_15, %c0_16] : memref<1x64xf32, #tpu.memory_space<vmem>>, vector<1x64xf32>
    %21 = vector.broadcast %20 : vector<1x64xf32> to vector<16x64xf32>
    %22 = arith.addf %19, %21 : vector<16x64xf32>
    %cst_17 = arith.constant 0.000000e+00 : f32
    %23 = vector.broadcast %cst_17 : f32 to vector<16x64xf32>
    %24 = arith.maximumf %22, %23 : vector<16x64xf32>
    %25 = arith.truncf %24 : vector<16x64xf32> to vector<16x64xbf16>
    %c0_18 = arith.constant 0 : index
    %c0_19 = arith.constant 0 : index
    %26 = vector.load %arg8[%c0_18, %c0_19] : memref<64x128xbf16, #tpu.memory_space<vmem>>, vector<64x128xbf16>
    %cst_20 = arith.constant dense<0.000000e+00> : vector<16x128xf32>
    %27 = tpu.matmul %25, %26, %cst_20 {dimension_numbers = #tpu.dot_dimension_numbers<[1], [0], [0], [1], [0, 0, 1, 1], [], []>} : vector<16x64xbf16>, vector<64x128xbf16>, vector<16x128xf32> -> vector<16x128xf32>
    %c0_21 = arith.constant 0 : index
    %c0_22 = arith.constant 0 : index
    %28 = vector.load %arg9[%c0_21, %c0_22] : memref<1x128xf32, #tpu.memory_space<vmem>>, vector<1x128xf32>
    %29 = vector.broadcast %28 : vector<1x128xf32> to vector<16x128xf32>
    %30 = arith.addf %27, %29 : vector<16x128xf32>
    %31 = tpu.iota {dimensions = array<i32: 1>} : vector<16x128xi32>
    %c10_i32 = arith.constant 10 : i32
    %32 = vector.broadcast %c10_i32 : i32 to vector<16x128xi32>
    %33 = arith.cmpi slt, %31, %32 : vector<16x128xi32>
    %cst_23 = arith.constant -1.000000e+30 : f32
    %34 = vector.broadcast %cst_23 : f32 to vector<16x128xf32>
    %35 = arith.select %33, %30, %34 : vector<16x128xi1>, vector<16x128xf32>
    %cst_24 = arith.constant dense<0xFF800000> : vector<16xf32>
    %36 = vector.multi_reduction <maximumf>, %35, %cst_24 [1] : vector<16x128xf32> to vector<16xf32>
    %37 = vector.shape_cast %36 : vector<16xf32> to vector<16x1xf32>
    %38 = vector.broadcast %37 : vector<16x1xf32> to vector<16x128xf32>
    %39 = arith.subf %30, %38 : vector<16x128xf32>
    %40 = math.exp %39 : vector<16x128xf32>
    %cst_25 = arith.constant 0.000000e+00 : f32
    %41 = vector.broadcast %cst_25 : f32 to vector<16x128xf32>
    %42 = arith.select %33, %40, %41 : vector<16x128xi1>, vector<16x128xf32>
    %cst_26 = arith.constant dense<0.000000e+00> : vector<16xf32>
    %43 = vector.multi_reduction <add>, %42, %cst_26 [1] : vector<16x128xf32> to vector<16xf32>
    %44 = vector.shape_cast %43 : vector<16xf32> to vector<16x1xf32>
    %45 = math.log %44 : vector<16x1xf32>
    %46 = vector.broadcast %45 : vector<16x1xf32> to vector<16x128xf32>
    %47 = arith.subf %39, %46 : vector<16x128xf32>
    %48 = arith.truncf %47 : vector<16x128xf32> to vector<16x128xbf16>
    %c0_27 = arith.constant 0 : index
    %c0_28 = arith.constant 0 : index
    %49 = vector.load %arg10[%c0_27, %c0_28] : memref<16x128xbf16, #tpu.memory_space<vmem>>, vector<16x128xbf16>
    tpu.vector_store %arg10[%c0_27, %c0_28], %48 {strides = array<i32>} : memref<16x128xbf16, #tpu.memory_space<vmem>>, vector<16x128xbf16>,
    return
  }
  func.func @transform_0(%arg0: i32) -> (i32, i32) {
    %c0_i32 = arith.constant 0 : i32
    %c0_i32_0 = arith.constant 0 : i32
    return %arg0, %c0_i32 : i32, i32
  }
  func.func @transform_1(%arg0: i32) -> (i32, i32) {
    %c0_i32 = arith.constant 0 : i32
    %c0_i32_0 = arith.constant 0 : i32
    %c0_i32_1 = arith.constant 0 : i32
    return %c0_i32, %c0_i32_0 : i32, i32
  }
  func.func @transform_2(%arg0: i32) -> (i32, i32) {
    %c0_i32 = arith.constant 0 : i32
    %c0_i32_0 = arith.constant 0 : i32
    %c0_i32_1 = arith.constant 0 : i32
    return %c0_i32, %c0_i32_0 : i32, i32
  }
  func.func @transform_3(%arg0: i32) -> (i32, i32) {
    %c0_i32 = arith.constant 0 : i32
    %c0_i32_0 = arith.constant 0 : i32
    %c0_i32_1 = arith.constant 0 : i32
    return %c0_i32, %c0_i32_0 : i32, i32
  }
  func.func @transform_4(%arg0: i32) -> (i32, i32) {
    %c0_i32 = arith.constant 0 : i32
    %c0_i32_0 = arith.constant 0 : i32
    %c0_i32_1 = arith.constant 0 : i32
    return %c0_i32, %c0_i32_0 : i32, i32
  }
  func.func @transform_5(%arg0: i32) -> (i32, i32) {
    %c0_i32 = arith.constant 0 : i32
    %c0_i32_0 = arith.constant 0 : i32
    %c0_i32_1 = arith.constant 0 : i32
    return %c0_i32, %c0_i32_0 : i32, i32
  }
  func.func @transform_6(%arg0: i32) -> (i32, i32) {
    %c0_i32 = arith.constant 0 : i32
    %c0_i32_0 = arith.constant 0 : i32
    %c0_i32_1 = arith.constant 0 : i32
    return %c0_i32, %c0_i32_0 : i32, i32
  }
  func.func @transform_7(%arg0: i32) -> (i32, i32) {
    %c0_i32 = arith.constant 0 : i32
    %c0_i32_0 = arith.constant 0 : i32
    %c0_i32_1 = arith.constant 0 : i32
    return %c0_i32, %c0_i32_0 : i32, i32
  }
  func.func @transform_8(%arg0: i32) -> (i32, i32) {
    %c0_i32 = arith.constant 0 : i32
    %c0_i32_0 = arith.constant 0 : i32
    %c0_i32_1 = arith.constant 0 : i32
    return %c0_i32, %c0_i32_0 : i32, i32
  }
  func.func @transform_9(%arg0: i32) -> (i32, i32) {
    %c0_i32 = arith.constant 0 : i32
    %c0_i32_0 = arith.constant 0 : i32
    return %arg0, %c0_i32 : i32, i32
  }
}

</mosaic_0001>

<llo_original>
// kernel: tpu_custom_call.1
$region0: #{tpu_custom_call.1}
  #allocation0 [shape = 'u32[]', space=smem, size = 0x4, offset = 0x4, fixed_abs, tag = 'smem constant byte address 0x4 - core index']
  #allocation1 [shape = 'u32[72,128]{1,0:T(1,128)}', space=vmem, size = 0x9000, scoped, tag = 'internal scratch']
  %s0 = inlined_call_operand.hbm [shape: f32[32,784], index: 0, kind: input, shape index: {}]
  %s1 = inlined_call_operand.hbm [shape: bf16[784,256], index: 1, kind: input, shape index: {}]
  %s2 = inlined_call_operand.vmem [shape: f32[1,256], index: 2, kind: input, shape index: {}]
  %s3 = inlined_call_operand.hbm [shape: bf16[256,128], index: 3, kind: input, shape index: {}]
  %s4 = inlined_call_operand.vmem [shape: f32[1,128], index: 4, kind: input, shape index: {}]
  %s5 = inlined_call_operand.vmem [shape: bf16[128,64], index: 5, kind: input, shape index: {}]
  %s6 = inlined_call_operand.vmem [shape: f32[1,64], index: 6, kind: input, shape index: {}]
  %s7 = inlined_call_operand.vmem [shape: bf16[64,128], index: 7, kind: input, shape index: {}]
  %s8 = inlined_call_operand.vmem [shape: f32[1,128], index: 8, kind: input, shape index: {}]
  %s9 = inlined_call_operand.hbm [shape: bf16[32,128], index: 9, kind: output, shape index: {}]
  %s10 = sld [smem:[#allocation0]]
  $region81: #{tpu_custom_call.1} parent=0
    _
  %s12 = ssub.s32 1, %s10
  %s13 = scalar_select 0, %s12, %s10
  $region1: #{tpu_custom_call.1} parent=0
    #allocation2 [shape = 'u8[114688]{0}', space=vmem, size = 0x1c000, scoped, tag = 'input window, operand 0']
    #allocation3 [shape = 's32[2]{0}', space=sflag, size = 0x8, scoped, tag = 'scoped memory for tpu_custom_call.1']
    #allocation4 [shape = 's32[2]{0}', space=sflag, size = 0x8, scoped, tag = 'scoped memory for tpu_custom_call.1']
    #allocation5 [shape = 'u8[401408]{0}', space=vmem, size = 0x62000, scoped, tag = 'input window, operand 1, single buffered']
    #allocation6 [shape = 's32[1]{0}', space=sflag, size = 0x4, scoped, tag = 'scoped memory for tpu_custom_call.1']
    #allocation7 [shape = 'u8[65536]{0}', space=vmem, size = 0x10000, scoped, tag = 'input window, operand 3, single buffered']
    #allocation8 [shape = 'u8[8192]{0}', space=vmem, size = 0x2000, scoped, tag = 'output window, operand 0']
    %14 = vsyncpa [#allocation3], 0
    %s15 = scalar_lea.sflag [#allocation3], 1
    %16 = vsyncpa %s15, 0
    %17 = vsyncpa [#allocation6], 0
    %18 = vsyncpa [#allocation4], 0
    %s19 = scalar_lea.sflag [#allocation4], 1
    %20 = vsyncpa %s19, 0
    loop: start=0, step=1, limit=4
    $region2: #{tpu_custom_call.1} parent=1 // loop_pre_header
      _
    $region3: #{tpu_custom_call.1} parent=1 // loop_header
      %s22 = sphi 0, %s26
      %p23 = scmp.ge.s32.totalorder %s22, 4
      %s32 = sphi 0, %s34
      %s35 = sphi 0, %s32
      %s36 = sphi 0, %s35
      %s52 = sphi 0, %s36
      %s56 = sphi 0, %s56
      %s58 = sphi 0, %s56
      %s59 = sphi 0, %s58
      %s73 = sphi 0, %s59
      %s77 = sphi 0, %s77
      %s79 = sphi 0, %s77
      %s80 = sphi 0, %s79
      %s94 = sphi 0, %s80
      %s98 = sphi 0, %s98
      %s100 = sphi 0, %s98
      %s101 = sphi 0, %s100
      %s115 = sphi 0, %s101
      %s119 = sphi 0, %s119
      %s121 = sphi 0, %s119
      %s122 = sphi 0, %s121
      %s136 = sphi 0, %s122
      %s140 = sphi 0, %s140
      %s142 = sphi 0, %s140
      %s143 = sphi 0, %s142
      %s157 = sphi 0, %s143
      %s161 = sphi 0, %s161
      %s163 = sphi 0, %s161
      %s164 = sphi 0, %s163
      %s178 = sphi 0, %s164
      %s182 = sphi 0, %s182
      %s184 = sphi 0, %s182
      %s185 = sphi 0, %s184
      %s199 = sphi 0, %s185
      %s203 = sphi 0, %s203
      %s205 = sphi 0, %s203
      %s206 = sphi 0, %s205
      %s220 = sphi 0, %s206
      %s226 = sphi 0, %s228
      %s229 = sphi 0, %s226
      %s230 = sphi 0, %s229
      %s246 = sphi 0, %s230
    $region4: #{tpu_custom_call.1} parent=1 // loop_header_branch
      %25 = sbr.rel (%p23) target = $region8
    $region5: #{tpu_custom_call.1} parent=1 // loop_body
      %s27 = ssub.s32 %s22, 1
      %s28 = ssub.s32 %s22, 2
      %s29 = sadd.s32 %s22, 1
      %s30 = ssub.s32 %s22, %s29
      %p31 = scmp.eq.s32.totalorder %s30, 0
      %s33 = sadd.s32 %s32, 1
      %s34 = scalar_select %p31, %s32, %s33
      %p37 = pneg %p31
      %p38 = scmp.eq.s32.totalorder %s22, 1
      %p39 = por %p37, %p38
      %p40 = scmp.ne.s32.totalorder %s32, %s35
      %p41 = scmp.eq.s32.totalorder %s22, 0
      %p42 = por %p40, %p41
      %p43 = scmp.ne.s32.totalorder %s32, %s35
      %p44 = scmp.eq.s32.totalorder %s27, 1
      %p45 = por %p43, %p44
      %p46 = scmp.ne.s32.totalorder %s35, %s36
      %p47 = scmp.eq.s32.totalorder %s27, 0
      %p48 = por %p46, %p47
      %p49 = scmp.ne.s32.totalorder %s35, %s36
      %p50 = scmp.eq.s32.totalorder %s28, 1
      %p51 = por %p49, %p50
      %p53 = scmp.ne.s32.totalorder %s36, %s52
      %p54 = scmp.eq.s32.totalorder %s28, 0
      %p55 = por %p53, %p54
      %s57 = sadd.s32 %s56, 1
      %p60 = scmp.eq.s32.totalorder %s22, 1
      %p61 = scmp.ne.s32.totalorder %s56, %s58
      %p62 = scmp.eq.s32.totalorder %s22, 0
      %p63 = por %p61, %p62
      %p64 = scmp.ne.s32.totalorder %s56, %s58
      %p65 = scmp.eq.s32.totalorder %s27, 1
      %p66 = por %p64, %p65
      %p67 = scmp.ne.s32.totalorder %s58, %s59
      %p68 = scmp.eq.s32.totalorder %s27, 0
      %p69 = por %p67, %p68
      %p70 = scmp.ne.s32.totalorder %s58, %s59
      %p71 = scmp.eq.s32.totalorder %s28, 1
      %p72 = por %p70, %p71
      %p74 = scmp.ne.s32.totalorder %s59, %s73
      %p75 = scmp.eq.s32.totalorder %s28, 0
      %p76 = por %p74, %p75
      %s78 = sadd.s32 %s77, 1
      %p81 = scmp.eq.s32.totalorder %s22, 1
      %p82 = scmp.ne.s32.totalorder %s77, %s79
      %p83 = scmp.eq.s32.totalorder %s22, 0
      %p84 = por %p82, %p83
      %p85 = scmp.ne.s32.totalorder %s77, %s79
      %p86 = scmp.eq.s32.totalorder %s27, 1
      %p87 = por %p85, %p86
      %p88 = scmp.ne.s32.totalorder %s79, %s80
      %p89 = scmp.eq.s32.totalorder %s27, 0
      %p90 = por %p88, %p89
      %p91 = scmp.ne.s32.totalorder %s79, %s80
      %p92 = scmp.eq.s32.totalorder %s28, 1
      %p93 = por %p91, %p92
      %p95 = scmp.ne.s32.totalorder %s80, %s94
      %p96 = scmp.eq.s32.totalorder %s28, 0
      %p97 = por %p95, %p96
      %s99 = sadd.s32 %s98, 1
      %p102 = scmp.eq.s32.totalorder %s22, 1
      %p103 = scmp.ne.s32.totalorder %s98, %s100
      %p104 = scmp.eq.s32.totalorder %s22, 0
      %p105 = por %p103, %p104
      %p106 = scmp.ne.s32.totalorder %s98, %s100
      %p107 = scmp.eq.s32.totalorder %s27, 1
      %p108 = por %p106, %p107
      %p109 = scmp.ne.s32.totalorder %s100, %s101
      %p110 = scmp.eq.s32.totalorder %s27, 0
      %p111 = por %p109, %p110
      %p112 = scmp.ne.s32.totalorder %s100, %s101
      %p113 = scmp.eq.s32.totalorder %s28, 1
      %p114 = por %p112, %p113
      %p116 = scmp.ne.s32.totalorder %s101, %s115
      %p117 = scmp.eq.s32.totalorder %s28, 0
      %p118 = por %p116, %p117
      %s120 = sadd.s32 %s119, 1
      %p123 = scmp.eq.s32.totalorder %s22, 1
      %p124 = scmp.ne.s32.totalorder %s119, %s121
      %p125 = scmp.eq.s32.totalorder %s22, 0
      %p126 = por %p124, %p125
      %p127 = scmp.ne.s32.totalorder %s119, %s121
      %p128 = scmp.eq.s32.totalorder %s27, 1
      %p129 = por %p127, %p128
      %p130 = scmp.ne.s32.totalorder %s121, %s122
      %p131 = scmp.eq.s32.totalorder %s27, 0
      %p132 = por %p130, %p131
      %p133 = scmp.ne.s32.totalorder %s121, %s122
      %p134 = scmp.eq.s32.totalorder %s28, 1
      %p135 = por %p133, %p134
      %p137 = scmp.ne.s32.totalorder %s122, %s136
      %p138 = scmp.eq.s32.totalorder %s28, 0
      %p139 = por %p137, %p138
      %s141 = sadd.s32 %s140, 1
      %p144 = scmp.eq.s32.totalorder %s22, 1
      %p145 = scmp.ne.s32.totalorder %s140, %s142
      %p146 = scmp.eq.s32.totalorder %s22, 0
      %p147 = por %p145, %p146
      %p148 = scmp.ne.s32.totalorder %s140, %s142
      %p149 = scmp.eq.s32.totalorder %s27, 1
      %p150 = por %p148, %p149
      %p151 = scmp.ne.s32.totalorder %s142, %s143
      %p152 = scmp.eq.s32.totalorder %s27, 0
      %p153 = por %p151, %p152
      %p154 = scmp.ne.s32.totalorder %s142, %s143
      %p155 = scmp.eq.s32.totalorder %s28, 1
      %p156 = por %p154, %p155
      %p158 = scmp.ne.s32.totalorder %s143, %s157
      %p159 = scmp.eq.s32.totalorder %s28, 0
      %p160 = por %p158, %p159
      %s162 = sadd.s32 %s161, 1
      %p165 = scmp.eq.s32.totalorder %s22, 1
      %p166 = scmp.ne.s32.totalorder %s161, %s163
      %p167 = scmp.eq.s32.totalorder %s22, 0
      %p168 = por %p166, %p167
      %p169 = scmp.ne.s32.totalorder %s161, %s163
      %p170 = scmp.eq.s32.totalorder %s27, 1
      %p171 = por %p169, %p170
      %p172 = scmp.ne.s32.totalorder %s163, %s164
      %p173 = scmp.eq.s32.totalorder %s27, 0
      %p174 = por %p172, %p173
      %p175 = scmp.ne.s32.totalorder %s163, %s164
      %p176 = scmp.eq.s32.totalorder %s28, 1
      %p177 = por %p175, %p176
      %p179 = scmp.ne.s32.totalorder %s164, %s178
      %p180 = scmp.eq.s32.totalorder %s28, 0
      %p181 = por %p179, %p180
      %s183 = sadd.s32 %s182, 1
      %p186 = scmp.eq.s32.totalorder %s22, 1
      %p187 = scmp.ne.s32.totalorder %s182, %s184
      %p188 = scmp.eq.s32.totalorder %s22, 0
      %p189 = por %p187, %p188
      %p190 = scmp.ne.s32.totalorder %s182, %s184
      %p191 = scmp.eq.s32.totalorder %s27, 1
      %p192 = por %p190, %p191
      %p193 = scmp.ne.s32.totalorder %s184, %s185
      %p194 = scmp.eq.s32.totalorder %s27, 0
      %p195 = por %p193, %p194
      %p196 = scmp.ne.s32.totalorder %s184, %s185
      %p197 = scmp.eq.s32.totalorder %s28, 1
      %p198 = por %p196, %p197
      %p200 = scmp.ne.s32.totalorder %s185, %s199
      %p201 = scmp.eq.s32.totalorder %s28, 0
      %p202 = por %p200, %p201
      %s204 = sadd.s32 %s203, 1
      %p207 = scmp.eq.s32.totalorder %s22, 1
      %p208 = scmp.ne.s32.totalorder %s203, %s205
      %p209 = scmp.eq.s32.totalorder %s22, 0
      %p210 = por %p208, %p209
      %p211 = scmp.ne.s32.totalorder %s203, %s205
      %p212 = scmp.eq.s32.totalorder %s27, 1
      %p213 = por %p211, %p212
      %p214 = scmp.ne.s32.totalorder %s205, %s206
      %p215 = scmp.eq.s32.totalorder %s27, 0
      %p216 = por %p214, %p215
      %p217 = scmp.ne.s32.totalorder %s205, %s206
      %p218 = scmp.eq.s32.totalorder %s28, 1
      %p219 = por %p217, %p218
      %p221 = scmp.ne.s32.totalorder %s206, %s220
      %p222 = scmp.eq.s32.totalorder %s28, 0
      %p223 = por %p221, %p222
      %s224 = ssub.s32 %s22, %s29
      %p225 = scmp.eq.s32.totalorder %s224, 0
      %s227 = sadd.s32 %s226, 1
      %s228 = scalar_select %p225, %s226, %s227
      %p231 = pneg %p225
      %p232 = scmp.eq.s32.totalorder %s22, 1
      %p233 = por %p231, %p232
      %p234 = scmp.ne.s32.totalorder %s226, %s229
      %p235 = scmp.eq.s32.totalorder %s22, 0
      %p236 = por %p234, %p235
      %p237 = scmp.ne.s32.totalorder %s226, %s229
      %p238 = scmp.eq.s32.totalorder %s27, 1
      %p239 = por %p237, %p238
      %p240 = scmp.ne.s32.totalorder %s229, %s230
      %p241 = scmp.eq.s32.totalorder %s27, 0
      %p242 = por %p240, %p241
      %p243 = scmp.ne.s32.totalorder %s229, %s230
      %p244 = scmp.eq.s32.totalorder %s28, 1
      %p245 = por %p243, %p244
      %p247 = scmp.ne.s32.totalorder %s230, %s246
      %p248 = scmp.eq.s32.totalorder %s28, 0
      %p249 = por %p247, %p248
      %p250 = scmp.le.s32.totalorder 1, %s22
      %p251 = scmp.lt.s32.totalorder %s22, 3
      %p252 = pnand %p250, %p251
      %p253 = pneg %p252
      // Predicated region
      $region9: #{tpu_custom_call.1} parent=5 // pred_check
        _
      $region10: #{tpu_custom_call.1} parent=5 // pred_check_branch
        %255 = sbr.rel (%p252) target = $region12
      $region11: #{tpu_custom_call.1} parent=5 // pred_region
        %s256 = ssub.s32 %s22, 1
        // Predicated region
        $region13: #{tpu_custom_call.1} parent=11 // pred_check
          %p257 = pneg %p69
        $region14: #{tpu_custom_call.1} parent=11 // pred_check_branch
          %259 = sbr.rel (%p257) target = $region16
        $region15: #{tpu_custom_call.1} parent=11 // pred_region
          %261 = vsyncadd [#allocation6], 0
          %s262 = sshll.u32 %s1, 4
          %s263 = int_to_ptr.hbm [resolvable:$true] %s262
          %s264 = sshll.u32 [#allocation5], 4
          %s265 = int_to_ptr.vmem [resolvable:$true] %s264
          %270 = dma.hbm_to_vmem [thread:$0]  %s263, 12544, %s265, [#allocation6], 128, 128, 8
        $region16: #{tpu_custom_call.1} parent=11 // pred_fallthru
          _
        // Predicated region
        $region17: #{tpu_custom_call.1} parent=11 // pred_check
          %p271 = pneg %p90
        $region18: #{tpu_custom_call.1} parent=11 // pred_check_branch
          %273 = sbr.rel (%p271) target = $region20
        $region19: #{tpu_custom_call.1} parent=11 // pred_region
          _
        $region20: #{tpu_custom_call.1} parent=11 // pred_fallthru
          _
        // Predicated region
        $region21: #{tpu_custom_call.1} parent=11 // pred_check
          %p274 = pneg %p111
        $region22: #{tpu_custom_call.1} parent=11 // pred_check_branch
          %276 = sbr.rel (%p274) target = $region24
        $region23: #{tpu_custom_call.1} parent=11 // pred_region
          %278 = vsyncadd [#allocation6], 0
          %s279 = sshll.u32 %s3, 4
          %s280 = int_to_ptr.hbm [resolvable:$true] %s279
          %s281 = sshll.u32 [#allocation7], 4
          %s282 = int_to_ptr.vmem [resolvable:$true] %s281
          %287 = dma.hbm_to_vmem [thread:$0]  %s280, 2048, %s282, [#allocation6], 64, 64, 4
        $region24: #{tpu_custom_call.1} parent=11 // pred_fallthru
          _
        // Predicated region
        $region25: #{tpu_custom_call.1} parent=11 // pred_check
          %p288 = pneg %p132
        $region26: #{tpu_custom_call.1} parent=11 // pred_check_branch
          %290 = sbr.rel (%p288) target = $region28
        $region27: #{tpu_custom_call.1} parent=11 // pred_region
          _
        $region28: #{tpu_custom_call.1} parent=11 // pred_fallthru
          _
        // Predicated region
        $region29: #{tpu_custom_call.1} parent=11 // pred_check
          %p291 = pneg %p153
        $region30: #{tpu_custom_call.1} parent=11 // pred_check_branch
          %293 = sbr.rel (%p291) target = $region32
        $region31: #{tpu_custom_call.1} parent=11 // pred_region
          _
        $region32: #{tpu_custom_call.1} parent=11 // pred_fallthru
          _
        // Predicated region
        $region33: #{tpu_custom_call.1} parent=11 // pred_check
          %p294 = pneg %p174
        $region34: #{tpu_custom_call.1} parent=11 // pred_check_branch
          %296 = sbr.rel (%p294) target = $region36
        $region35: #{tpu_custom_call.1} parent=11 // pred_region
          _
        $region36: #{tpu_custom_call.1} parent=11 // pred_fallthru
          _
        // Predicated region
        $region37: #{tpu_custom_call.1} parent=11 // pred_check
          %p297 = pneg %p195
        $region38: #{tpu_custom_call.1} parent=11 // pred_check_branch
          %299 = sbr.rel (%p297) target = $region40
        $region39: #{tpu_custom_call.1} parent=11 // pred_region
          _
        $region40: #{tpu_custom_call.1} parent=11 // pred_fallthru
          _
        // Predicated region
        $region41: #{tpu_custom_call.1} parent=11 // pred_check
          %p300 = pneg %p216
        $region42: #{tpu_custom_call.1} parent=11 // pred_check_branch
          %302 = sbr.rel (%p300) target = $region44
        $region43: #{tpu_custom_call.1} parent=11 // pred_region
          _
        $region44: #{tpu_custom_call.1} parent=11 // pred_fallthru
          _
      $region12: #{tpu_custom_call.1} parent=5 // pred_fallthru
        _
      %p303 = scmp.lt.s32.totalorder %s22, 2
      // Predicated region
      $region45: #{tpu_custom_call.1} parent=5 // pred_check
        %p304 = pneg %p303
      $region46: #{tpu_custom_call.1} parent=5 // pred_check_branch
        %306 = sbr.rel (%p304) target = $region48
      $region47: #{tpu_custom_call.1} parent=5 // pred_region
        // Predicated region
        $region49: #{tpu_custom_call.1} parent=47 // pred_check
          %p307 = pneg %p42
        $region50: #{tpu_custom_call.1} parent=47 // pred_check_branch
          %309 = sbr.rel (%p307) target = $region52
        $region51: #{tpu_custom_call.1} parent=47 // pred_region
          %s310 = sand.u32 %s32, 1
          %s311 = scalar_lea.sflag [#allocation3], %s310
          %s312 = sand.u32 %s32, 1
          %s313 = smul.addr %s312, 112
          %s314 = scalar_lea.vmem [#allocation2], %s313
          %s315 = smul.u32 2, %s22
          %317 = vsyncadd %s311, 0
          %s318 = smul.addr %s315, 7
          %s319 = smul.addr %s318, 8
          %s320 = scalar_lea.hbm %s0, %s319
          %s321 = sshll.u32 %s320, 4
          %s322 = int_to_ptr.hbm [resolvable:$true] %s321
          %s323 = sshll.u32 %s314, 4
          %s324 = int_to_ptr.vmem [resolvable:$true] %s323
          %329 = dma.hbm_to_vmem [thread:$0]  %s322, 1792, %s324, %s311, 896, 896, 56
        $region52: #{tpu_custom_call.1} parent=47 // pred_fallthru
          _
      $region48: #{tpu_custom_call.1} parent=5 // pred_fallthru
        _
      %p330 = scmp.le.s32.totalorder 1, %s22
      %p331 = scmp.lt.s32.totalorder %s22, 3
      %p332 = pnand %p330, %p331
      %p333 = pneg %p332
      // Predicated region
      $region53: #{tpu_custom_call.1} parent=5 // pred_check
        _
      $region54: #{tpu_custom_call.1} parent=5 // pred_check_branch
        %335 = sbr.rel (%p332) target = $region56
      $region55: #{tpu_custom_call.1} parent=5 // pred_region
        %s336 = ssub.s32 %s22, 1
        %s337 = sand.u32 %s35, 1
        %s338 = scalar_lea.sflag [#allocation3], %s337
        %s339 = sand.u32 %s35, 1
        %s340 = smul.addr %s339, 112
        %s341 = scalar_lea.vmem [#allocation2], %s340
        // Predicated region
        $region57: #{tpu_custom_call.1} parent=55 // pred_check
          %p342 = pneg %p48
        $region58: #{tpu_custom_call.1} parent=55 // pred_check_branch
          %344 = sbr.rel (%p342) target = $region60
        $region59: #{tpu_custom_call.1} parent=55 // pred_region
          %346 = dma.done %s338, 1792
        $region60: #{tpu_custom_call.1} parent=55 // pred_fallthru
          _
        // Predicated region
        $region61: #{tpu_custom_call.1} parent=55 // pred_check
          %p347 = pneg %p69
        $region62: #{tpu_custom_call.1} parent=55 // pred_check_branch
          %349 = sbr.rel (%p347) target = $region64
        $region63: #{tpu_custom_call.1} parent=55 // pred_region
          %351 = dma.done [#allocation6], 12544
        $region64: #{tpu_custom_call.1} parent=55 // pred_fallthru
          _
        // Predicated region
        $region65: #{tpu_custom_call.1} parent=55 // pred_check
          %p352 = pneg %p111
        $region66: #{tpu_custom_call.1} parent=55 // pred_check_branch
          %354 = sbr.rel (%p352) target = $region68
        $region67: #{tpu_custom_call.1} parent=55 // pred_region
          %356 = dma.done [#allocation6], 2048
        $region68: #{tpu_custom_call.1} parent=55 // pred_fallthru
          _
        %s357 = sand.u32 %s35, 1
        %s358 = scalar_lea.sflag [#allocation3], %s357
        %s359 = sand.u32 %s35, 1
        %s360 = smul.addr %s359, 112
        %s361 = scalar_lea.vmem [#allocation2], %s360
        %p362 = pneg %p48
        %p363 = pneg %p45
        %p364 = pneg %p69
        %p365 = pneg %p66
        %p366 = pneg %p90
        %p367 = pneg %p87
        %p368 = pneg %p111
        %p369 = pneg %p108
        %p370 = pneg %p132
        %p371 = pneg %p129
        %p372 = pneg %p153
        %p373 = pneg %p150
        %p374 = pneg %p174
        %p375 = pneg %p171
        %p376 = pneg %p195
        %p377 = pneg %p192
        %p378 = pneg %p216
        %p379 = pneg %p213
        %p380 = pneg %p242
        %p381 = pneg %p239
        %s382 = sand.u32 %s229, 1
        %s383 = scalar_lea.sflag [#allocation4], %s382
        %s384 = sand.u32 %s229, 1
        %s385 = smul.addr %s384, 8
        %s386 = scalar_lea.vmem [#allocation8], %s385
        %s387 = smul.u32 2, %s27
        %s388 = smul.u32 2, %s27
        %v390 = vld [vmem:[%s341] sm:$0xff]
        %v391 = vld [vmem:[%s341 + $0x8] sm:$0xff]
        %v392 = vld [vmem:[%s341 + $0x10] sm:$0xff]
        %v393 = vld [vmem:[%s341 + $0x18] sm:$0xff]
        %v394 = vld [vmem:[%s341 + $0x20] sm:$0xff]
        %v395 = vld [vmem:[%s341 + $0x28] sm:$0xff]
        %v396 = vld [vmem:[%s341 + $0x30] sm:$0xff]
        %v397 = vld [vmem:[%s341 + $0x38] sm:$0xff]
        %v398 = vld [vmem:[%s341 + $0x40] sm:$0xff]
        %v399 = vld [vmem:[%s341 + $0x48] sm:$0xff]
        %v400 = vld [vmem:[%s341 + $0x50] sm:$0xff]
        %v401 = vld [vmem:[%s341 + $0x58] sm:$0xff]
        %v402 = vld [vmem:[%s341 + $0x60] sm:$0xff]
        %v403 = vld [vmem:[%s341 + $0x68] sm:$0xff]
        %v404 = vpack.c.bf16 %v397, %v390
        %v405 = vpack.c.bf16 %v398, %v391
        %v406 = vpack.c.bf16 %v399, %v392
        %v407 = vpack.c.bf16 %v400, %v393
        %v408 = vpack.c.bf16 %v401, %v394
        %v409 = vpack.c.bf16 %v402, %v395
        %v410 = vpack.c.bf16 %v403, %v396
        %v411 = vld [vmem:[#allocation5] sm:$0xff]
        %v412 = vld [vmem:[#allocation5 + $0x8] sm:$0xff]
        %v413 = vld [vmem:[#allocation5 + $0x10] sm:$0xff]
        %v414 = vld [vmem:[#allocation5 + $0x18] sm:$0xff]
        %v415 = vld [vmem:[#allocation5 + $0x20] sm:$0xff]
        %v416 = vld [vmem:[#allocation5 + $0x28] sm:$0xff]
        %v417 = vld [vmem:[#allocation5 + $0x30] sm:$0xff]
        %v418 = vld [vmem:[#allocation5 + $0x38] sm:$0xff]
        %v419 = vld [vmem:[#allocation5 + $0x40] sm:$0xff]
        %v420 = vld [vmem:[#allocation5 + $0x48] sm:$0xff]
        %v421 = vld [vmem:[#allocation5 + $0x50] sm:$0xff]
        %v422 = vld [vmem:[#allocation5 + $0x58] sm:$0xff]
        %v423 = vld [vmem:[#allocation5 + $0x60] sm:$0xff]
        %v424 = vld [vmem:[#allocation5 + $0x68] sm:$0xff]
        %v425 = vld [vmem:[#allocation5 + $0x70] sm:$0xff]
        %v426 = vld [vmem:[#allocation5 + $0x78] sm:$0xff]
        %v427 = vld [vmem:[#allocation5 + $0x80] sm:$0xff]
        %v428 = vld [vmem:[#allocation5 + $0x88] sm:$0xff]
        %v429 = vld [vmem:[#allocation5 + $0x90] sm:$0xff]
        %v430 = vld [vmem:[#allocation5 + $0x98] sm:$0xff]
        %v431 = vld [vmem:[#allocation5 + $0xa0] sm:$0xff]
        %v432 = vld [vmem:[#allocation5 + $0xa8] sm:$0xff]
        %v433 = vld [vmem:[#allocation5 + $0xb0] sm:$0xff]
        %v434 = vld [vmem:[#allocation5 + $0xb8] sm:$0xff]
        %v435 = vld [vmem:[#allocation5 + $0xc0] sm:$0xff]
        %v436 = vld [vmem:[#allocation5 + $0xc8] sm:$0xff]
        %v437 = vld [vmem:[#allocation5 + $0xd0] sm:$0xff]
        %v438 = vld [vmem:[#allocation5 + $0xd8] sm:$0xff]
        %v439 = vld [vmem:[#allocation5 + $0xe0] sm:$0xff]
        %v440 = vld [vmem:[#allocation5 + $0xe8] sm:$0xff]
        %v441 = vld [vmem:[#allocation5 + $0xf0] sm:$0xff]
        %v442 = vld [vmem:[#allocation5 + $0xf8] sm:$0xff]
        %v443 = vld [vmem:[#allocation5 + $0x100] sm:$0xff]
        %v444 = vld [vmem:[#allocation5 + $0x108] sm:$0xff]
        %v445 = vld [vmem:[#allocation5 + $0x110] sm:$0xff]
        %v446 = vld [vmem:[#allocation5 + $0x118] sm:$0xff]
        %v447 = vld [vmem:[#allocation5 + $0x120] sm:$0xff]
        %v448 = vld [vmem:[#allocation5 + $0x128] sm:$0xff]
        %v449 = vld [vmem:[#allocation5 + $0x130] sm:$0xff]
        %v450 = vld [vmem:[#allocation5 + $0x138] sm:$0xff]
        %v451 = vld [vmem:[#allocation5 + $0x140] sm:$0xff]
        %v452 = vld [vmem:[#allocation5 + $0x148] sm:$0xff]
        %v453 = vld [vmem:[#allocation5 + $0x150] sm:$0xff]
        %v454 = vld [vmem:[#allocation5 + $0x158] sm:$0xff]
        %v455 = vld [vmem:[#allocation5 + $0x160] sm:$0xff]
        %v456 = vld [vmem:[#allocation5 + $0x168] sm:$0xff]
        %v457 = vld [vmem:[#allocation5 + $0x170] sm:$0xff]
        %v458 = vld [vmem:[#allocation5 + $0x178] sm:$0xff]
        %v459 = vld [vmem:[#allocation5 + $0x180] sm:$0xff]
        %v460 = vld [vmem:[#allocation5 + $0x188] sm:$0xff]
        %v461 = vld [vmem:[#allocation5 + $0x190] sm:$0xff]
        %v462 = vld [vmem:[#allocation5 + $0x198] sm:$0xff]
        %v463 = vld [vmem:[#allocation5 + $0x1a0] sm:$0xff]
        %v464 = vld [vmem:[#allocation5 + $0x1a8] sm:$0xff]
        %v465 = vld [vmem:[#allocation5 + $0x1b0] sm:$0xff]
        %v466 = vld [vmem:[#allocation5 + $0x1b8] sm:$0xff]
        %v467 = vld [vmem:[#allocation5 + $0x1c0] sm:$0xff]
        %v468 = vld [vmem:[#allocation5 + $0x1c8] sm:$0xff]
        %v469 = vld [vmem:[#allocation5 + $0x1d0] sm:$0xff]
        %v470 = vld [vmem:[#allocation5 + $0x1d8] sm:$0xff]
        %v471 = vld [vmem:[#allocation5 + $0x1e0] sm:$0xff]
        %v472 = vld [vmem:[#allocation5 + $0x1e8] sm:$0xff]
        %v473 = vld [vmem:[#allocation5 + $0x1f0] sm:$0xff]
        %v474 = vld [vmem:[#allocation5 + $0x1f8] sm:$0xff]
        %v475 = vld [vmem:[#allocation5 + $0x200] sm:$0xff]
        %v476 = vld [vmem:[#allocation5 + $0x208] sm:$0xff]
        %v477 = vld [vmem:[#allocation5 + $0x210] sm:$0xff]
        %v478 = vld [vmem:[#allocation5 + $0x218] sm:$0xff]
        %v479 = vld [vmem:[#allocation5 + $0x220] sm:$0xff]
        %v480 = vld [vmem:[#allocation5 + $0x228] sm:$0xff]
        %v481 = vld [vmem:[#allocation5 + $0x230] sm:$0xff]
        %v482 = vld [vmem:[#allocation5 + $0x238] sm:$0xff]
        %v483 = vld [vmem:[#allocation5 + $0x240] sm:$0xff]
        %v484 = vld [vmem:[#allocation5 + $0x248] sm:$0xff]
        %v485 = vld [vmem:[#allocation5 + $0x250] sm:$0xff]
        %v486 = vld [vmem:[#allocation5 + $0x258] sm:$0xff]
        %v487 = vld [vmem:[#allocation5 + $0x260] sm:$0xff]
        %v488 = vld [vmem:[#allocation5 + $0x268] sm:$0xff]
        %v489 = vld [vmem:[#allocation5 + $0x270] sm:$0xff]
        %v490 = vld [vmem:[#allocation5 + $0x278] sm:$0xff]
        %v491 = vld [vmem:[#allocation5 + $0x280] sm:$0xff]
        %v492 = vld [vmem:[#allocation5 + $0x288] sm:$0xff]
        %v493 = vld [vmem:[#allocation5 + $0x290] sm:$0xff]
        %v494 = vld [vmem:[#allocation5 + $0x298] sm:$0xff]
        %v495 = vld [vmem:[#allocation5 + $0x2a0] sm:$0xff]
        %v496 = vld [vmem:[#allocation5 + $0x2a8] sm:$0xff]
        %v497 = vld [vmem:[#allocation5 + $0x2b0] sm:$0xff]
        %v498 = vld [vmem:[#allocation5 + $0x2b8] sm:$0xff]
        %v499 = vld [vmem:[#allocation5 + $0x2c0] sm:$0xff]
        %v500 = vld [vmem:[#allocation5 + $0x2c8] sm:$0xff]
        %v501 = vld [vmem:[#allocation5 + $0x2d0] sm:$0xff]
        %v502 = vld [vmem:[#allocation5 + $0x2d8] sm:$0xff]
        %v503 = vld [vmem:[#allocation5 + $0x2e0] sm:$0xff]
        %v504 = vld [vmem:[#allocation5 + $0x2e8] sm:$0xff]
        %v505 = vld [vmem:[#allocation5 + $0x2f0] sm:$0xff]
        %v506 = vld [vmem:[#allocation5 + $0x2f8] sm:$0xff]
        %v507 = vld [vmem:[#allocation5 + $0x300] sm:$0xff]
        %v508 = vld [vmem:[#allocation5 + $0x308] sm:$0xff]
        %v509 = vld [vmem:[%s2] sm:$0x3]
        %v511 = vperm.slane %v509, 0
        %v512 = vperm.slane %v509, 1
        %v613 = vunpack.c.l.b16 %v411
        %v614 = vunpack.c.h.b16 %v411
        %v615 = vunpack.c.l.b16 %v412
        %v616 = vunpack.c.h.b16 %v412
        %v617 = vunpack.c.l.b16 %v413
        %v618 = vunpack.c.h.b16 %v413
        %v619 = vunpack.c.l.b16 %v414
        %v620 = vunpack.c.h.b16 %v414
        %v621 = vunpack.c.l.b16 %v415
        %v622 = vunpack.c.h.b16 %v415
        %v623 = vunpack.c.l.b16 %v416
        %v624 = vunpack.c.h.b16 %v416
        %v625 = vunpack.c.l.b16 %v417
        %v626 = vunpack.c.h.b16 %v417
        %v627 = vunpack.c.l.b16 %v418
        %v628 = vunpack.c.h.b16 %v418
        %v629 = vunpack.c.l.b16 %v419
        %v630 = vunpack.c.h.b16 %v419
        %v631 = vunpack.c.l.b16 %v420
        %v632 = vunpack.c.h.b16 %v420
        %v633 = vunpack.c.l.b16 %v421
        %v634 = vunpack.c.h.b16 %v421
        %v635 = vunpack.c.l.b16 %v422
        %v636 = vunpack.c.h.b16 %v422
        %v637 = vunpack.c.l.b16 %v423
        %v638 = vunpack.c.h.b16 %v423
        %v639 = vunpack.c.l.b16 %v424
        %v640 = vunpack.c.h.b16 %v424
        %v641 = vunpack.c.l.b16 %v425
        %v642 = vunpack.c.h.b16 %v425
        %v643 = vunpack.c.l.b16 %v426
        %v644 = vunpack.c.h.b16 %v426
        %v645 = vunpack.c.l.b16 %v427
        %v646 = vunpack.c.h.b16 %v427
        %v647 = vunpack.c.l.b16 %v428
        %v648 = vunpack.c.h.b16 %v428
        %v649 = vunpack.c.l.b16 %v429
        %v650 = vunpack.c.h.b16 %v429
        %v651 = vunpack.c.l.b16 %v430
        %v652 = vunpack.c.h.b16 %v430
        %v653 = vunpack.c.l.b16 %v431
        %v654 = vunpack.c.h.b16 %v431
        %v655 = vunpack.c.l.b16 %v432
        %v656 = vunpack.c.h.b16 %v432
        %v657 = vunpack.c.l.b16 %v433
        %v658 = vunpack.c.h.b16 %v433
        %v659 = vunpack.c.l.b16 %v434
        %v660 = vunpack.c.h.b16 %v434
        %v661 = vunpack.c.l.b16 %v435
        %v662 = vunpack.c.h.b16 %v435
        %v663 = vunpack.c.l.b16 %v436
        %v664 = vunpack.c.h.b16 %v436
        %v665 = vunpack.c.l.b16 %v437
        %v666 = vunpack.c.h.b16 %v437
        %v667 = vunpack.c.l.b16 %v438
        %v668 = vunpack.c.h.b16 %v438
        %v669 = vunpack.c.l.b16 %v439
        %v670 = vunpack.c.h.b16 %v439
        %v671 = vunpack.c.l.b16 %v440
        %v672 = vunpack.c.h.b16 %v440
        %v673 = vunpack.c.l.b16 %v441
        %v674 = vunpack.c.h.b16 %v441
        %v675 = vunpack.c.l.b16 %v442
        %v676 = vunpack.c.h.b16 %v442
        %v677 = vunpack.c.l.b16 %v443
        %v678 = vunpack.c.h.b16 %v443
        %v679 = vunpack.c.l.b16 %v444
        %v680 = vunpack.c.h.b16 %v444
        %v681 = vunpack.c.l.b16 %v445
        %v682 = vunpack.c.h.b16 %v445
        %v683 = vunpack.c.l.b16 %v446
        %v684 = vunpack.c.h.b16 %v446
        %v685 = vunpack.c.l.b16 %v447
        %v686 = vunpack.c.h.b16 %v447
        %v687 = vunpack.c.l.b16 %v448
        %v688 = vunpack.c.h.b16 %v448
        %v689 = vunpack.c.l.b16 %v449
        %v690 = vunpack.c.h.b16 %v449
        %v691 = vunpack.c.l.b16 %v450
        %v692 = vunpack.c.h.b16 %v450
        %v693 = vunpack.c.l.b16 %v451
        %v694 = vunpack.c.h.b16 %v451
        %v695 = vunpack.c.l.b16 %v452
        %v696 = vunpack.c.h.b16 %v452
        %v697 = vunpack.c.l.b16 %v453
        %v698 = vunpack.c.h.b16 %v453
        %v699 = vunpack.c.l.b16 %v454
        %v700 = vunpack.c.h.b16 %v454
        %v701 = vunpack.c.l.b16 %v455
        %v702 = vunpack.c.h.b16 %v455
        %v703 = vunpack.c.l.b16 %v456
        %v704 = vunpack.c.h.b16 %v456
        %v705 = vunpack.c.l.b16 %v457
        %v706 = vunpack.c.h.b16 %v457
        %v707 = vunpack.c.l.b16 %v458
        %v708 = vunpack.c.h.b16 %v458
        %v709 = vunpack.c.l.b16 %v459
        %v710 = vunpack.c.h.b16 %v459
        %v711 = vunpack.c.l.b16 %v460
        %v712 = vunpack.c.h.b16 %v460
        %v713 = vunpack.c.l.b16 %v461
        %v714 = vunpack.c.h.b16 %v461
        %v715 = vunpack.c.l.b16 %v462
        %v716 = vunpack.c.h.b16 %v462
        %v717 = vunpack.c.l.b16 %v463
        %v718 = vunpack.c.h.b16 %v463
        %v719 = vunpack.c.l.b16 %v464
        %v720 = vunpack.c.h.b16 %v464
        %v721 = vunpack.c.l.b16 %v465
        %v722 = vunpack.c.h.b16 %v465
        %v723 = vunpack.c.l.b16 %v466
        %v724 = vunpack.c.h.b16 %v466
        %v725 = vunpack.c.l.b16 %v467
        %v726 = vunpack.c.h.b16 %v467
        %v727 = vunpack.c.l.b16 %v468
        %v728 = vunpack.c.h.b16 %v468
        %v729 = vunpack.c.l.b16 %v469
        %v730 = vunpack.c.h.b16 %v469
        %v731 = vunpack.c.l.b16 %v470
        %v732 = vunpack.c.h.b16 %v470
        %v733 = vunpack.c.l.b16 %v471
        %v734 = vunpack.c.h.b16 %v471
        %v735 = vunpack.c.l.b16 %v472
        %v736 = vunpack.c.h.b16 %v472
        %v737 = vunpack.c.l.b16 %v473
        %v738 = vunpack.c.h.b16 %v473
        %v739 = vunpack.c.l.b16 %v474
        %v740 = vunpack.c.h.b16 %v474
        %v741 = vunpack.c.l.b16 %v475
        %v742 = vunpack.c.h.b16 %v475
        %v743 = vunpack.c.l.b16 %v476
        %v744 = vunpack.c.h.b16 %v476
        %v745 = vunpack.c.l.b16 %v477
        %v746 = vunpack.c.h.b16 %v477
        %v747 = vunpack.c.l.b16 %v478
        %v748 = vunpack.c.h.b16 %v478
        %v749 = vunpack.c.l.b16 %v479
        %v750 = vunpack.c.h.b16 %v479
        %v751 = vunpack.c.l.b16 %v480
        %v752 = vunpack.c.h.b16 %v480
        %v753 = vunpack.c.l.b16 %v481
        %v754 = vunpack.c.h.b16 %v481
        %v755 = vunpack.c.l.b16 %v482
        %v756 = vunpack.c.h.b16 %v482
        %v757 = vunpack.c.l.b16 %v483
        %v758 = vunpack.c.h.b16 %v483
        %v759 = vunpack.c.l.b16 %v484
        %v760 = vunpack.c.h.b16 %v484
        %v761 = vunpack.c.l.b16 %v485
        %v762 = vunpack.c.h.b16 %v485
        %v763 = vunpack.c.l.b16 %v486
        %v764 = vunpack.c.h.b16 %v486
        %v765 = vunpack.c.l.b16 %v487
        %v766 = vunpack.c.h.b16 %v487
        %v767 = vunpack.c.l.b16 %v488
        %v768 = vunpack.c.h.b16 %v488
        %v769 = vunpack.c.l.b16 %v489
        %v770 = vunpack.c.h.b16 %v489
        %v771 = vunpack.c.l.b16 %v490
        %v772 = vunpack.c.h.b16 %v490
        %v773 = vunpack.c.l.b16 %v491
        %v774 = vunpack.c.h.b16 %v491
        %v775 = vunpack.c.l.b16 %v492
        %v776 = vunpack.c.h.b16 %v492
        %v777 = vunpack.c.l.b16 %v493
        %v778 = vunpack.c.h.b16 %v493
        %v779 = vunpack.c.l.b16 %v494
        %v780 = vunpack.c.h.b16 %v494
        %v781 = vunpack.c.l.b16 %v495
        %v782 = vunpack.c.h.b16 %v495
        %v783 = vunpack.c.l.b16 %v496
        %v784 = vunpack.c.h.b16 %v496
        %v785 = vunpack.c.l.b16 %v497
        %v786 = vunpack.c.h.b16 %v497
        %v787 = vunpack.c.l.b16 %v498
        %v788 = vunpack.c.h.b16 %v498
        %v789 = vunpack.c.l.b16 %v499
        %v790 = vunpack.c.h.b16 %v499
        %v791 = vunpack.c.l.b16 %v500
        %v792 = vunpack.c.h.b16 %v500
        %v793 = vunpack.c.l.b16 %v501
        %v794 = vunpack.c.h.b16 %v501
        %v795 = vunpack.c.l.b16 %v502
        %v796 = vunpack.c.h.b16 %v502
        %v797 = vunpack.c.l.b16 %v503
        %v798 = vunpack.c.h.b16 %v503
        %v799 = vunpack.c.l.b16 %v504
        %v800 = vunpack.c.h.b16 %v504
        %v801 = vunpack.c.l.b16 %v505
        %v802 = vunpack.c.h.b16 %v505
        %v803 = vunpack.c.l.b16 %v506
        %v804 = vunpack.c.h.b16 %v506
        %v805 = vunpack.c.l.b16 %v507
        %v806 = vunpack.c.h.b16 %v507
        %v807 = vunpack.c.l.b16 %v508
        %v808 = vunpack.c.h.b16 %v508
        %v809 = vpack.c.b16 %v615, %v613
        %v810 = vpack.c.b16 %v616, %v614
        %v811 = vpack.c.b16 %v619, %v617
        %v812 = vpack.c.b16 %v620, %v618
        %v813 = vpack.c.b16 %v623, %v621
        %v814 = vpack.c.b16 %v624, %v622
        %v815 = vpack.c.b16 %v627, %v625
        %v816 = vpack.c.b16 %v628, %v626
        %v817 = vpack.c.b16 %v631, %v629
        %v818 = vpack.c.b16 %v632, %v630
        %v819 = vpack.c.b16 %v635, %v633
        %v820 = vpack.c.b16 %v636, %v634
        %v821 = vpack.c.b16 %v639, %v637
        %v822 = vpack.c.b16 %v640, %v638
        %v823 = vpack.c.b16 %v643, %v641
        %v824 = vpack.c.b16 %v644, %v642
        %v825 = vpack.c.b16 %v647, %v645
        %v826 = vpack.c.b16 %v648, %v646
        %v827 = vpack.c.b16 %v651, %v649
        %v828 = vpack.c.b16 %v652, %v650
        %v829 = vpack.c.b16 %v655, %v653
        %v830 = vpack.c.b16 %v656, %v654
        %v831 = vpack.c.b16 %v659, %v657
        %v832 = vpack.c.b16 %v660, %v658
        %v833 = vpack.c.b16 %v663, %v661
        %v834 = vpack.c.b16 %v664, %v662
        %v835 = vpack.c.b16 %v667, %v665
        %v836 = vpack.c.b16 %v668, %v666
        %v837 = vpack.c.b16 %v671, %v669
        %v838 = vpack.c.b16 %v672, %v670
        %v839 = vpack.c.b16 %v675, %v673
        %v840 = vpack.c.b16 %v676, %v674
        %v841 = vpack.c.b16 %v679, %v677
        %v842 = vpack.c.b16 %v680, %v678
        %v843 = vpack.c.b16 %v683, %v681
        %v844 = vpack.c.b16 %v684, %v682
        %v845 = vpack.c.b16 %v687, %v685
        %v846 = vpack.c.b16 %v688, %v686
        %v847 = vpack.c.b16 %v691, %v689
        %v848 = vpack.c.b16 %v692, %v690
        %v849 = vpack.c.b16 %v695, %v693
        %v850 = vpack.c.b16 %v696, %v694
        %v851 = vpack.c.b16 %v699, %v697
        %v852 = vpack.c.b16 %v700, %v698
        %v853 = vpack.c.b16 %v703, %v701
        %v854 = vpack.c.b16 %v704, %v702
        %v855 = vpack.c.b16 %v707, %v705
        %v856 = vpack.c.b16 %v708, %v706
        %v857 = vpack.c.b16 %v711, %v709
        %v858 = vpack.c.b16 %v712, %v710
        %v859 = vpack.c.b16 %v715, %v713
        %v860 = vpack.c.b16 %v716, %v714
        %v861 = vpack.c.b16 %v719, %v717
        %v862 = vpack.c.b16 %v720, %v718
        %v863 = vpack.c.b16 %v723, %v721
        %v864 = vpack.c.b16 %v724, %v722
        %v865 = vpack.c.b16 %v727, %v725
        %v866 = vpack.c.b16 %v728, %v726
        %v867 = vpack.c.b16 %v731, %v729
        %v868 = vpack.c.b16 %v732, %v730
        %v869 = vpack.c.b16 %v735, %v733
        %v870 = vpack.c.b16 %v736, %v734
        %v871 = vpack.c.b16 %v739, %v737
        %v872 = vpack.c.b16 %v740, %v738
        %v873 = vpack.c.b16 %v743, %v741
        %v874 = vpack.c.b16 %v744, %v742
        %v875 = vpack.c.b16 %v747, %v745
        %v876 = vpack.c.b16 %v748, %v746
        %v877 = vpack.c.b16 %v751, %v749
        %v878 = vpack.c.b16 %v752, %v750
        %v879 = vpack.c.b16 %v755, %v753
        %v880 = vpack.c.b16 %v756, %v754
        %v881 = vpack.c.b16 %v759, %v757
        %v882 = vpack.c.b16 %v760, %v758
        %v883 = vpack.c.b16 %v763, %v761
        %v884 = vpack.c.b16 %v764, %v762
        %v885 = vpack.c.b16 %v767, %v765
        %v886 = vpack.c.b16 %v768, %v766
        %v887 = vpack.c.b16 %v771, %v769
        %v888 = vpack.c.b16 %v772, %v770
        %v889 = vpack.c.b16 %v775, %v773
        %v890 = vpack.c.b16 %v776, %v774
        %v891 = vpack.c.b16 %v779, %v777
        %v892 = vpack.c.b16 %v780, %v778
        %v893 = vpack.c.b16 %v783, %v781
        %v894 = vpack.c.b16 %v784, %v782
        %v895 = vpack.c.b16 %v787, %v785
        %v896 = vpack.c.b16 %v788, %v786
        %v897 = vpack.c.b16 %v791, %v789
        %v898 = vpack.c.b16 %v792, %v790
        %v899 = vpack.c.b16 %v795, %v793
        %v900 = vpack.c.b16 %v796, %v794
        %v901 = vpack.c.b16 %v799, %v797
        %v902 = vpack.c.b16 %v800, %v798
        %v903 = vpack.c.b16 %v803, %v801
        %v904 = vpack.c.b16 %v804, %v802
        %v905 = vpack.c.b16 %v807, %v805
        %v906 = vpack.c.b16 %v808, %v806
        %vm1005 = vcmask 130048
        %v1007 = vsel %vm1005, %v410, 0
        %1009 = vmatpush.bf16.msra.mxu0 %v823
        %1010 = vmatpush.bf16.msra.mxu0 %v821
        %1011 = vmatpush.bf16.msra.mxu0 %v819
        %1012 = vmatpush.bf16.msra.mxu0 %v817
        %1013 = vmatpush.bf16.msra.mxu0 %v815
        %1014 = vmatpush.bf16.msra.mxu0 %v813
        %1015 = vmatpush.bf16.msra.mxu0 %v811
        %1016 = vmatpush.bf16.msra.mxu0 %v809
        %1017 = vmatmul.bf16.gmra.mxu0 %v404
        %v1018 = vpop.f32.mrf.mxu0
        %v1019 = vadd.f32 %v511, %v1018
        %v1020 = vpop.f32.mrf.mxu0
        %v1021 = vadd.f32 %v511, %v1020
        %1022 = vdwg.mxu0
        %1023 = vmatpush.bf16.msra.mxu0 %v839
        %1024 = vmatpush.bf16.msra.mxu0 %v837
        %1025 = vmatpush.bf16.msra.mxu0 %v835
        %1026 = vmatpush.bf16.msra.mxu0 %v833
        %1027 = vmatpush.bf16.msra.mxu0 %v831
        %1028 = vmatpush.bf16.msra.mxu0 %v829
        %1029 = vmatpush.bf16.msra.mxu0 %v827
        %1030 = vmatpush.bf16.msra.mxu0 %v825
        %1031 = vmatmul.bf16.gmra.mxu0 %v405
        %v1032 = vpop.f32.mrf.mxu0
        %v1033 = vadd.f32 %v1019, %v1032
        %v1034 = vpop.f32.mrf.mxu0
        %v1035 = vadd.f32 %v1021, %v1034
        %1036 = vdwg.mxu0
        %1037 = vmatpush.bf16.msra.mxu0 %v855
        %1038 = vmatpush.bf16.msra.mxu0 %v853
        %1039 = vmatpush.bf16.msra.mxu0 %v851
        %1040 = vmatpush.bf16.msra.mxu0 %v849
        %1041 = vmatpush.bf16.msra.mxu0 %v847
        %1042 = vmatpush.bf16.msra.mxu0 %v845
        %1043 = vmatpush.bf16.msra.mxu0 %v843
        %1044 = vmatpush.bf16.msra.mxu0 %v841
        %1045 = vmatmul.bf16.gmra.mxu0 %v406
        %v1046 = vpop.f32.mrf.mxu0
        %v1047 = vadd.f32 %v1033, %v1046
        %v1048 = vpop.f32.mrf.mxu0
        %v1049 = vadd.f32 %v1035, %v1048
        %1050 = vdwg.mxu0
        %1051 = vmatpush.bf16.msra.mxu0 %v871
        %1052 = vmatpush.bf16.msra.mxu0 %v869
        %1053 = vmatpush.bf16.msra.mxu0 %v867
        %1054 = vmatpush.bf16.msra.mxu0 %v865
        %1055 = vmatpush.bf16.msra.mxu0 %v863
        %1056 = vmatpush.bf16.msra.mxu0 %v861
        %1057 = vmatpush.bf16.msra.mxu0 %v859
        %1058 = vmatpush.bf16.msra.mxu0 %v857
        %1059 = vmatmul.bf16.gmra.mxu0 %v407
        %v1060 = vpop.f32.mrf.mxu0
        %v1061 = vadd.f32 %v1047, %v1060
        %v1062 = vpop.f32.mrf.mxu0
        %v1063 = vadd.f32 %v1049, %v1062
        %1064 = vdwg.mxu0
        %1065 = vmatpush.bf16.msra.mxu0 %v887
        %1066 = vmatpush.bf16.msra.mxu0 %v885
        %1067 = vmatpush.bf16.msra.mxu0 %v883
        %1068 = vmatpush.bf16.msra.mxu0 %v881
        %1069 = vmatpush.bf16.msra.mxu0 %v879
        %1070 = vmatpush.bf16.msra.mxu0 %v877
        %1071 = vmatpush.bf16.msra.mxu0 %v875
        %1072 = vmatpush.bf16.msra.mxu0 %v873
        %1073 = vmatmul.bf16.gmra.mxu0 %v408
        %v1074 = vpop.f32.mrf.mxu0
        %v1075 = vadd.f32 %v1061, %v1074
        %v1076 = vpop.f32.mrf.mxu0
        %v1077 = vadd.f32 %v1063, %v1076
        %1078 = vdwg.mxu0
        %1079 = vmatpush.bf16.msra.mxu0 %v903
        %1080 = vmatpush.bf16.msra.mxu0 %v901
        %1081 = vmatpush.bf16.msra.mxu0 %v899
        %1082 = vmatpush.bf16.msra.mxu0 %v897
        %1083 = vmatpush.bf16.msra.mxu0 %v895
        %1084 = vmatpush.bf16.msra.mxu0 %v893
        %1085 = vmatpush.bf16.msra.mxu0 %v891
        %1086 = vmatpush.bf16.msra.mxu0 %v889
        %1087 = vmatmul.bf16.gmra.mxu0 %v409
        %v1088 = vpop.f32.mrf.mxu0
        %v1089 = vadd.f32 %v1075, %v1088
        %v1090 = vpop.f32.mrf.mxu0
        %v1091 = vadd.f32 %v1077, %v1090
        %1092 = vdwg.mxu0
        %1093 = vmatpush.bf16.msra.mxu0 0
        %1094 = vmatpush.bf16.msra.mxu0 0
        %1095 = vmatpush.bf16.msra.mxu0 0
        %1096 = vmatpush.bf16.msra.mxu0 0
        %1097 = vmatpush.bf16.msra.mxu0 0
        %1098 = vmatpush.bf16.msra.mxu0 0
        %1099 = vmatpush.bf16.msra.mxu0 0
        %1100 = vmatpush.bf16.msra.mxu0 %v905
        %1101 = vmatmul.bf16.gmra.mxu0 %v1007
        %v1102 = vpop.f32.mrf.mxu0
        %v1103 = vadd.f32 %v1089, %v1102
        %v1104 = vpop.f32.mrf.mxu0
        %v1105 = vadd.f32 %v1091, %v1104
        %1106 = vdwg.mxu0
        %1107 = vmatpush.bf16.msra.mxu0 %v824
        %1108 = vmatpush.bf16.msra.mxu0 %v822
        %1109 = vmatpush.bf16.msra.mxu0 %v820
        %1110 = vmatpush.bf16.msra.mxu0 %v818
        %1111 = vmatpush.bf16.msra.mxu0 %v816
        %1112 = vmatpush.bf16.msra.mxu0 %v814
        %1113 = vmatpush.bf16.msra.mxu0 %v812
        %1114 = vmatpush.bf16.msra.mxu0 %v810
        %1115 = vmatmul.bf16.gmra.mxu0 %v404
        %v1116 = vpop.f32.mrf.mxu0
        %v1117 = vadd.f32 %v512, %v1116
        %v1118 = vpop.f32.mrf.mxu0
        %v1119 = vadd.f32 %v512, %v1118
        %1120 = vdwg.mxu0
        %1121 = vmatpush.bf16.msra.mxu0 %v840
        %1122 = vmatpush.bf16.msra.mxu0 %v838
        %1123 = vmatpush.bf16.msra.mxu0 %v836
        %1124 = vmatpush.bf16.msra.mxu0 %v834
        %1125 = vmatpush.bf16.msra.mxu0 %v832
        %1126 = vmatpush.bf16.msra.mxu0 %v830
        %1127 = vmatpush.bf16.msra.mxu0 %v828
        %1128 = vmatpush.bf16.msra.mxu0 %v826
        %1129 = vmatmul.bf16.gmra.mxu0 %v405
        %v1130 = vpop.f32.mrf.mxu0
        %v1131 = vadd.f32 %v1117, %v1130
        %v1132 = vpop.f32.mrf.mxu0
        %v1133 = vadd.f32 %v1119, %v1132
        %1134 = vdwg.mxu0
        %1135 = vmatpush.bf16.msra.mxu0 %v856
        %1136 = vmatpush.bf16.msra.mxu0 %v854
        %1137 = vmatpush.bf16.msra.mxu0 %v852
        %1138 = vmatpush.bf16.msra.mxu0 %v850
        %1139 = vmatpush.bf16.msra.mxu0 %v848
        %1140 = vmatpush.bf16.msra.mxu0 %v846
        %1141 = vmatpush.bf16.msra.mxu0 %v844
        %1142 = vmatpush.bf16.msra.mxu0 %v842
        %1143 = vmatmul.bf16.gmra.mxu0 %v406
        %v1144 = vpop.f32.mrf.mxu0
        %v1145 = vadd.f32 %v1131, %v1144
        %v1146 = vpop.f32.mrf.mxu0
        %v1147 = vadd.f32 %v1133, %v1146
        %1148 = vdwg.mxu0
        %1149 = vmatpush.bf16.msra.mxu0 %v872
        %1150 = vmatpush.bf16.msra.mxu0 %v870
        %1151 = vmatpush.bf16.msra.mxu0 %v868
        %1152 = vmatpush.bf16.msra.mxu0 %v866
        %1153 = vmatpush.bf16.msra.mxu0 %v864
        %1154 = vmatpush.bf16.msra.mxu0 %v862
        %1155 = vmatpush.bf16.msra.mxu0 %v860
        %1156 = vmatpush.bf16.msra.mxu0 %v858
        %1157 = vmatmul.bf16.gmra.mxu0 %v407
        %v1158 = vpop.f32.mrf.mxu0
        %v1159 = vadd.f32 %v1145, %v1158
        %v1160 = vpop.f32.mrf.mxu0
        %v1161 = vadd.f32 %v1147, %v1160
        %1162 = vdwg.mxu0
        %1163 = vmatpush.bf16.msra.mxu0 %v888
        %1164 = vmatpush.bf16.msra.mxu0 %v886
        %1165 = vmatpush.bf16.msra.mxu0 %v884
        %1166 = vmatpush.bf16.msra.mxu0 %v882
        %1167 = vmatpush.bf16.msra.mxu0 %v880
        %1168 = vmatpush.bf16.msra.mxu0 %v878
        %1169 = vmatpush.bf16.msra.mxu0 %v876
        %1170 = vmatpush.bf16.msra.mxu0 %v874
        %1171 = vmatmul.bf16.gmra.mxu0 %v408
        %v1172 = vpop.f32.mrf.mxu0
        %v1173 = vadd.f32 %v1159, %v1172
        %v1174 = vpop.f32.mrf.mxu0
        %v1175 = vadd.f32 %v1161, %v1174
        %1176 = vdwg.mxu0
        %1177 = vmatpush.bf16.msra.mxu0 %v904
        %1178 = vmatpush.bf16.msra.mxu0 %v902
        %1179 = vmatpush.bf16.msra.mxu0 %v900
        %1180 = vmatpush.bf16.msra.mxu0 %v898
        %1181 = vmatpush.bf16.msra.mxu0 %v896
        %1182 = vmatpush.bf16.msra.mxu0 %v894
        %1183 = vmatpush.bf16.msra.mxu0 %v892
        %1184 = vmatpush.bf16.msra.mxu0 %v890
        %1185 = vmatmul.bf16.gmra.mxu0 %v409
        %v1186 = vpop.f32.mrf.mxu0
        %v1187 = vadd.f32 %v1173, %v1186
        %v1188 = vpop.f32.mrf.mxu0
        %v1189 = vadd.f32 %v1175, %v1188
        %1190 = vdwg.mxu0
        %1191 = vmatpush.bf16.msra.mxu0 0
        %1192 = vmatpush.bf16.msra.mxu0 0
        %1193 = vmatpush.bf16.msra.mxu0 0
        %1194 = vmatpush.bf16.msra.mxu0 0
        %1195 = vmatpush.bf16.msra.mxu0 0
        %1196 = vmatpush.bf16.msra.mxu0 0
        %1197 = vmatpush.bf16.msra.mxu0 0
        %1198 = vmatpush.bf16.msra.mxu0 %v906
        %1199 = vmatmul.bf16.gmra.mxu0 %v1007
        %v1200 = vpop.f32.mrf.mxu0
        %v1201 = vadd.f32 %v1187, %v1200
        %v1202 = vpop.f32.mrf.mxu0
        %v1203 = vadd.f32 %v1189, %v1202
        %1204 = vdwg.mxu0
        %v1205 = vmax.f32 %v1103, 0.0
        %v1206 = vmax.f32 %v1201, 0.0
        %v1207 = vmax.f32 %v1105, 0.0
        %v1208 = vmax.f32 %v1203, 0.0
        %v1209 = vpack.c.bf16 %v1207, %v1205
        %v1210 = vpack.c.bf16 %v1208, %v1206
        %v1211 = vld [vmem:[#allocation7] sm:$0xf]
        %v1212 = vld [vmem:[#allocation7 + $0x4] sm:$0xf]
        %v1213 = vld [vmem:[#allocation7 + $0x8] sm:$0xf]
        %v1214 = vld [vmem:[#allocation7 + $0xc] sm:$0xf]
        %v1215 = vld [vmem:[#allocation7 + $0x10] sm:$0xf]
        %v1216 = vld [vmem:[#allocation7 + $0x14] sm:$0xf]
        %v1217 = vld [vmem:[#allocation7 + $0x18] sm:$0xf]
        %v1218 = vld [vmem:[#allocation7 + $0x1c] sm:$0xf]
        %v1219 = vld [vmem:[#allocation7 + $0x20] sm:$0xf]
        %v1220 = vld [vmem:[#allocation7 + $0x24] sm:$0xf]
        %v1221 = vld [vmem:[#allocation7 + $0x28] sm:$0xf]
        %v1222 = vld [vmem:[#allocation7 + $0x2c] sm:$0xf]
        %v1223 = vld [vmem:[#allocation7 + $0x30] sm:$0xf]
        %v1224 = vld [vmem:[#allocation7 + $0x34] sm:$0xf]
        %v1225 = vld [vmem:[#allocation7 + $0x38] sm:$0xf]
        %v1226 = vld [vmem:[#allocation7 + $0x3c] sm:$0xf]
        %v1227 = vld [vmem:[#allocation7 + $0x40] sm:$0xf]
        %v1228 = vld [vmem:[#allocation7 + $0x44] sm:$0xf]
        %v1229 = vld [vmem:[#allocation7 + $0x48] sm:$0xf]
        %v1230 = vld [vmem:[#allocation7 + $0x4c] sm:$0xf]
        %v1231 = vld [vmem:[#allocation7 + $0x50] sm:$0xf]
        %v1232 = vld [vmem:[#allocation7 + $0x54] sm:$0xf]
        %v1233 = vld [vmem:[#allocation7 + $0x58] sm:$0xf]
        %v1234 = vld [vmem:[#allocation7 + $0x5c] sm:$0xf]
        %v1235 = vld [vmem:[#allocation7 + $0x60] sm:$0xf]
        %v1236 = vld [vmem:[#allocation7 + $0x64] sm:$0xf]
        %v1237 = vld [vmem:[#allocation7 + $0x68] sm:$0xf]
        %v1238 = vld [vmem:[#allocation7 + $0x6c] sm:$0xf]
        %v1239 = vld [vmem:[#allocation7 + $0x70] sm:$0xf]
        %v1240 = vld [vmem:[#allocation7 + $0x74] sm:$0xf]
        %v1241 = vld [vmem:[#allocation7 + $0x78] sm:$0xf]
        %v1242 = vld [vmem:[#allocation7 + $0x7c] sm:$0xf]
        %v1243 = vld [vmem:[%s4] sm:$0x1]
        %v1245 = vperm.slane %v1243, 0
        %v1279 = vunpack.c.l.b16 %v1211
        %v1280 = vunpack.c.l.b16 %v1212
        %v1281 = vunpack.c.l.b16 %v1213
        %v1282 = vunpack.c.l.b16 %v1214
        %v1283 = vunpack.c.l.b16 %v1215
        %v1284 = vunpack.c.l.b16 %v1216
        %v1285 = vunpack.c.l.b16 %v1217
        %v1286 = vunpack.c.l.b16 %v1218
        %v1287 = vunpack.c.l.b16 %v1219
        %v1288 = vunpack.c.l.b16 %v1220
        %v1289 = vunpack.c.l.b16 %v1221
        %v1290 = vunpack.c.l.b16 %v1222
        %v1291 = vunpack.c.l.b16 %v1223
        %v1292 = vunpack.c.l.b16 %v1224
        %v1293 = vunpack.c.l.b16 %v1225
        %v1294 = vunpack.c.l.b16 %v1226
        %v1295 = vunpack.c.l.b16 %v1227
        %v1296 = vunpack.c.l.b16 %v1228
        %v1297 = vunpack.c.l.b16 %v1229
        %v1298 = vunpack.c.l.b16 %v1230
        %v1299 = vunpack.c.l.b16 %v1231
        %v1300 = vunpack.c.l.b16 %v1232
        %v1301 = vunpack.c.l.b16 %v1233
        %v1302 = vunpack.c.l.b16 %v1234
        %v1303 = vunpack.c.l.b16 %v1235
        %v1304 = vunpack.c.l.b16 %v1236
        %v1305 = vunpack.c.l.b16 %v1237
        %v1306 = vunpack.c.l.b16 %v1238
        %v1307 = vunpack.c.l.b16 %v1239
        %v1308 = vunpack.c.l.b16 %v1240
        %v1309 = vunpack.c.l.b16 %v1241
        %v1310 = vunpack.c.l.b16 %v1242
        %v1311 = vpack.c.b16 %v1280, %v1279
        %v1312 = vpack.c.b16 %v1282, %v1281
        %v1313 = vpack.c.b16 %v1284, %v1283
        %v1314 = vpack.c.b16 %v1286, %v1285
        %v1315 = vpack.c.b16 %v1288, %v1287
        %v1316 = vpack.c.b16 %v1290, %v1289
        %v1317 = vpack.c.b16 %v1292, %v1291
        %v1318 = vpack.c.b16 %v1294, %v1293
        %v1319 = vpack.c.b16 %v1296, %v1295
        %v1320 = vpack.c.b16 %v1298, %v1297
        %v1321 = vpack.c.b16 %v1300, %v1299
        %v1322 = vpack.c.b16 %v1302, %v1301
        %v1323 = vpack.c.b16 %v1304, %v1303
        %v1324 = vpack.c.b16 %v1306, %v1305
        %v1325 = vpack.c.b16 %v1308, %v1307
        %v1326 = vpack.c.b16 %v1310, %v1309
        %1343 = vmatpush.bf16.msra.mxu0 %v1318
        %1344 = vmatpush.bf16.msra.mxu0 %v1317
        %1345 = vmatpush.bf16.msra.mxu0 %v1316
        %1346 = vmatpush.bf16.msra.mxu0 %v1315
        %1347 = vmatpush.bf16.msra.mxu0 %v1314
        %1348 = vmatpush.bf16.msra.mxu0 %v1313
        %1349 = vmatpush.bf16.msra.mxu0 %v1312
        %1350 = vmatpush.bf16.msra.mxu0 %v1311
        %1351 = vmatmul.bf16.gmra.mxu0 %v1209
        %v1352 = vpop.f32.mrf.mxu0
        %v1353 = vadd.f32 %v1245, %v1352
        %v1354 = vpop.f32.mrf.mxu0
        %v1355 = vadd.f32 %v1245, %v1354
        %1356 = vdwg.mxu0
        %1357 = vmatpush.bf16.msra.mxu0 %v1326
        %1358 = vmatpush.bf16.msra.mxu0 %v1325
        %1359 = vmatpush.bf16.msra.mxu0 %v1324
        %1360 = vmatpush.bf16.msra.mxu0 %v1323
        %1361 = vmatpush.bf16.msra.mxu0 %v1322
        %1362 = vmatpush.bf16.msra.mxu0 %v1321
        %1363 = vmatpush.bf16.msra.mxu0 %v1320
        %1364 = vmatpush.bf16.msra.mxu0 %v1319
        %1365 = vmatmul.bf16.gmra.mxu0 %v1210
        %v1366 = vpop.f32.mrf.mxu0
        %v1367 = vadd.f32 %v1353, %v1366
        %v1368 = vpop.f32.mrf.mxu0
        %v1369 = vadd.f32 %v1355, %v1368
        %1370 = vdwg.mxu0
        %v1371 = vmax.f32 %v1367, 0.0
        %v1372 = vmax.f32 %v1369, 0.0
        %v1373 = vpack.c.bf16 %v1372, %v1371
        %v1374 = vld [vmem:[%s5] sm:$0xf]
        %v1375 = vld [vmem:[%s5 + $0x4] sm:$0xf]
        %v1376 = vld [vmem:[%s5 + $0x8] sm:$0xf]
        %v1377 = vld [vmem:[%s5 + $0xc] sm:$0xf]
        %v1378 = vld [vmem:[%s5 + $0x10] sm:$0xf]
        %v1379 = vld [vmem:[%s5 + $0x14] sm:$0xf]
        %v1380 = vld [vmem:[%s5 + $0x18] sm:$0xf]
        %v1381 = vld [vmem:[%s5 + $0x1c] sm:$0xf]
        %v1382 = vld [vmem:[%s5 + $0x20] sm:$0xf]
        %v1383 = vld [vmem:[%s5 + $0x24] sm:$0xf]
        %v1384 = vld [vmem:[%s5 + $0x28] sm:$0xf]
        %v1385 = vld [vmem:[%s5 + $0x2c] sm:$0xf]
        %v1386 = vld [vmem:[%s5 + $0x30] sm:$0xf]
        %v1387 = vld [vmem:[%s5 + $0x34] sm:$0xf]
        %v1388 = vld [vmem:[%s5 + $0x38] sm:$0xf]
        %v1389 = vld [vmem:[%s5 + $0x3c] sm:$0xf]
        %v1390 = vld [vmem:[%s6] sm:$0x1]
        %v1392 = vperm.slane %v1390, 0
        %v1410 = vunpack.c.l.b16 %v1374
        %v1411 = vunpack.c.l.b16 %v1375
        %v1412 = vunpack.c.l.b16 %v1376
        %v1413 = vunpack.c.l.b16 %v1377
        %v1414 = vunpack.c.l.b16 %v1378
        %v1415 = vunpack.c.l.b16 %v1379
        %v1416 = vunpack.c.l.b16 %v1380
        %v1417 = vunpack.c.l.b16 %v1381
        %v1418 = vunpack.c.l.b16 %v1382
        %v1419 = vunpack.c.l.b16 %v1383
        %v1420 = vunpack.c.l.b16 %v1384
        %v1421 = vunpack.c.l.b16 %v1385
        %v1422 = vunpack.c.l.b16 %v1386
        %v1423 = vunpack.c.l.b16 %v1387
        %v1424 = vunpack.c.l.b16 %v1388
        %v1425 = vunpack.c.l.b16 %v1389
        %v1426 = vpack.c.b16 %v1411, %v1410
        %v1427 = vpack.c.b16 %v1413, %v1412
        %v1428 = vpack.c.b16 %v1415, %v1414
        %v1429 = vpack.c.b16 %v1417, %v1416
        %v1430 = vpack.c.b16 %v1419, %v1418
        %v1431 = vpack.c.b16 %v1421, %v1420
        %v1432 = vpack.c.b16 %v1423, %v1422
        %v1433 = vpack.c.b16 %v1425, %v1424
        %1442 = vmatpush.bf16.msra.mxu0 %v1433
        %1443 = vmatpush.bf16.msra.mxu0 %v1432
        %1444 = vmatpush.bf16.msra.mxu0 %v1431
        %1445 = vmatpush.bf16.msra.mxu0 %v1430
        %1446 = vmatpush.bf16.msra.mxu0 %v1429
        %1447 = vmatpush.bf16.msra.mxu0 %v1428
        %1448 = vmatpush.bf16.msra.mxu0 %v1427
        %1449 = vmatpush.bf16.msra.mxu0 %v1426
        %1450 = vmatmul.bf16.gmra.mxu0 %v1373
        %v1451 = vpop.f32.mrf.mxu0
        %v1452 = vadd.f32 %v1392, %v1451
        %v1453 = vpop.f32.mrf.mxu0
        %v1454 = vadd.f32 %v1392, %v1453
        %1455 = vdwg.mxu0
        %v1456 = vmax.f32 %v1452, 0.0
        %v1457 = vmax.f32 %v1454, 0.0
        %v1458 = vpack.c.bf16 %v1457, %v1456
        %v1459 = vld [vmem:[%s7] sm:$0xf]
        %v1460 = vld [vmem:[%s7 + $0x4] sm:$0xf]
        %v1461 = vld [vmem:[%s7 + $0x8] sm:$0xf]
        %v1462 = vld [vmem:[%s7 + $0xc] sm:$0xf]
        %v1463 = vld [vmem:[%s7 + $0x10] sm:$0xf]
        %v1464 = vld [vmem:[%s7 + $0x14] sm:$0xf]
        %v1465 = vld [vmem:[%s7 + $0x18] sm:$0xf]
        %v1466 = vld [vmem:[%s7 + $0x1c] sm:$0xf]
        %v1467 = vld [vmem:[%s8] sm:$0x1]
        %v1469 = vperm.slane %v1467, 0
        %v1479 = vunpack.c.l.b16 %v1459
        %v1480 = vunpack.c.l.b16 %v1460
        %v1481 = vunpack.c.l.b16 %v1461
        %v1482 = vunpack.c.l.b16 %v1462
        %v1483 = vunpack.c.l.b16 %v1463
        %v1484 = vunpack.c.l.b16 %v1464
        %v1485 = vunpack.c.l.b16 %v1465
        %v1486 = vunpack.c.l.b16 %v1466
        %v1487 = vpack.c.b16 %v1480, %v1479
        %v1488 = vpack.c.b16 %v1482, %v1481
        %v1489 = vpack.c.b16 %v1484, %v1483
        %v1490 = vpack.c.b16 %v1486, %v1485
        %vm1495 = vcmask 523264
        %v1497 = vsel %vm1495, %v1458, 0
        %1499 = vmatpush.bf16.msra.mxu0 0
        %1500 = vmatpush.bf16.msra.mxu0 0
        %1501 = vmatpush.bf16.msra.mxu0 0
        %1502 = vmatpush.bf16.msra.mxu0 0
        %1503 = vmatpush.bf16.msra.mxu0 %v1490
        %1504 = vmatpush.bf16.msra.mxu0 %v1489
        %1505 = vmatpush.bf16.msra.mxu0 %v1488
        %1506 = vmatpush.bf16.msra.mxu0 %v1487
        %1507 = vmatmul.bf16.gmra.mxu0 %v1497
        %v1508 = vpop.f32.mrf.mxu0
        %v1509 = vadd.f32 %v1469, %v1508
        %v1510 = vpop.f32.mrf.mxu0
        %v1511 = vadd.f32 %v1469, %v1510
        %1512 = vdwg.mxu0
        %v1513 = vlaneseq
        %v1514 = vand.u32 %v1513, 127
        %vm1515 = vcmp.lt.s32.totalorder %v1514, 10
        %v1516 = vsel %vm1515, %v1509, -1e+30
        %v1517 = vsel %vm1515, %v1511, -1e+30
        %1518 = vmax.xlane.f32.xlu0 %v1516
        %v1519 = vpop.xlane.xlu0 %1518
        %1520 = vmax.xlane.f32.xlu0 %v1517
        %v1521 = vpop.xlane.xlu0 %1520
        %v1522 = vsub.f32 %v1509, %v1519
        %v1523 = vsub.f32 %v1511, %v1521
        %v1524 = vmul.f32 %v1522, 1.442695
        %v1525 = vpow.pop %v1524
        %v1526 = vmul.f32 %v1523, 1.442695
        %v1527 = vpow.pop %v1526
        %v1528 = vsel %vm1515, %v1525, 0.0
        %v1529 = vsel %vm1515, %v1527, 0.0
        %1530 = vadd.xlane.f32.xlu0 %v1528
        %v1531 = vpop.xlane.xlu0 %1530
        %1532 = vadd.xlane.f32.xlu0 %v1529
        %v1533 = vpop.xlane.xlu0 %1532
        %v1534 = vlog2.pop %v1531
        %v1535 = vmul.f32 %v1534, 0.6931472
        %v1536 = vlog2.pop %v1533
        %v1537 = vmul.f32 %v1536, 0.6931472
        %v1538 = vsub.f32 %v1522, %v1535
        %v1539 = vsub.f32 %v1523, %v1537
        %v1540 = vpack.c.bf16 %v1538, %v1538
        %v1541 = vpack.c.bf16 %v1539, %v1539
        %1542 = vst [vmem:[%s386] sm:$0xf] %v1540
        %1543 = vst [vmem:[%s386 + $0x4] sm:$0xf] %v1541
        %s1544 = sand.u32 %s229, 1
        %s1545 = scalar_lea.sflag [#allocation4], %s1544
        %s1546 = sand.u32 %s229, 1
        %s1547 = smul.addr %s1546, 8
        %s1548 = scalar_lea.vmem [#allocation8], %s1547
        // Predicated region
        $region69: #{tpu_custom_call.1} parent=55 // pred_check
          %p1549 = pneg %p239
        $region70: #{tpu_custom_call.1} parent=55 // pred_check_branch
          %1551 = sbr.rel (%p1549) target = $region72
        $region71: #{tpu_custom_call.1} parent=55 // pred_region
          %s1552 = smul.u32 2, %s27
          %1554 = vsyncadd %s1545, 0
          %s1555 = smul.addr %s1552, 4
          %s1556 = scalar_lea.hbm %s9, %s1555
          %s1557 = sshll.u32 %s1548, 4
          %s1558 = int_to_ptr.vmem [resolvable:$true] %s1557
          %s1559 = sshll.u32 %s1556, 4
          %s1560 = int_to_ptr.hbm [resolvable:$true] %s1559
          %1565 = dma.vmem_to_hbm [thread:$0]  %s1558, 128, %s1560, %s1545, 64, 64, 4
        $region72: #{tpu_custom_call.1} parent=55 // pred_fallthru
          _
      $region56: #{tpu_custom_call.1} parent=5 // pred_fallthru
        _
      %p1566 = scmp.le.s32.totalorder 2, %s22
      // Predicated region
      $region73: #{tpu_custom_call.1} parent=5 // pred_check
        %p1567 = pneg %p1566
      $region74: #{tpu_custom_call.1} parent=5 // pred_check_branch
        %1569 = sbr.rel (%p1567) target = $region76
      $region75: #{tpu_custom_call.1} parent=5 // pred_region
        %s1570 = ssub.s32 %s22, 2
        // Predicated region
        $region77: #{tpu_custom_call.1} parent=75 // pred_check
          %p1571 = pneg %p245
        $region78: #{tpu_custom_call.1} parent=75 // pred_check_branch
          %1573 = sbr.rel (%p1571) target = $region80
        $region79: #{tpu_custom_call.1} parent=75 // pred_region
          %s1574 = sand.u32 %s230, 1
          %s1575 = scalar_lea.sflag [#allocation4], %s1574
          %s1576 = sand.u32 %s230, 1
          %s1577 = smul.addr %s1576, 8
          %s1578 = scalar_lea.vmem [#allocation8], %s1577
          %1580 = dma.done %s1575, 128
        $region80: #{tpu_custom_call.1} parent=75 // pred_fallthru
          _
      $region76: #{tpu_custom_call.1} parent=5 // pred_fallthru
        _
    $region6: #{tpu_custom_call.1} parent=1 // loop_footer
      %s26 = sadd.s32 1, %s22
    $region7: #{tpu_custom_call.1} parent=1 // loop_footer_branch
      %21 = sbr.rel target = $region3
    $region8: #{tpu_custom_call.1} parent=1 // loop_exit
      _
    %1581 = vsyncpa [#allocation3], 1
    %s1582 = scalar_lea.sflag [#allocation3], 1
    %1583 = vsyncpa %s1582, 1
    %1584 = vsyncpa [#allocation6], 1
    %1585 = vsyncpa [#allocation4], 1
    %s1586 = scalar_lea.sflag [#allocation4], 1
    %1587 = vsyncpa %s1586, 1

</llo_original>
